<compile_context>
chip_gen: v7x
topology: tpu7x:2x2x1
jax: 0.10.0
libtpu: 0.0.40
codegen_flags: <defaults>
</compile_context>

<pallas_src>
import functools

import jax
import jax.numpy as jnp
import numpy as np
from jax import lax
from jax.experimental import pallas as pl
from jax.experimental.pallas import tpu as pltpu

CP = 128    # padded cnn_layers lane width
NCP = 128   # padded num_classes lane width
OUT_SUB = 8  # sublane-dense rows per bag in the output slab


def _round_up(x, m):
    return ((x + m - 1) // m) * m


# ----------------------------------------------------------------------------
# Kernel 1: sentence encoder (tiled over sentences)
#   conv2d(1, C, (KH, E)) as im2col matmul, max over time, +bias, tanh -> sent
#   batch_e = sent @ RW^T + Rb                                         -> e
# ----------------------------------------------------------------------------
def _encoder_kernel(im_ref, w_ref, bc_ref, rwt_ref, rb_ref, sent_ref, e_ref,
                    *, TN, Tp, T):
    # One lane-dense MXU matmul for the whole conv of this sentence tile.
    conv = jnp.dot(im_ref[...], w_ref[...],
                   preferred_element_type=jnp.float32)        # (TN*Tp, CP)
    conv = conv.reshape(TN, Tp, CP)                           # Tp multiple of 8
    tidx = lax.broadcasted_iota(jnp.int32, (1, Tp, CP), 1)
    conv = jnp.where(tidx < T, conv, jnp.float32(-1e30))      # mask padded times
    # Conv bias is constant over time -> add it after the max.
    cnn = jnp.max(conv, axis=1) + bc_ref[...]                 # (TN, CP)
    sent = jnp.tanh(cnn)                                      # dropout = id (eval)
    sent_ref[...] = sent
    e_ref[...] = jnp.dot(sent, rwt_ref[...],
                         preferred_element_type=jnp.float32) + rb_ref[...]


def encode_sentences(im_flat, w_flat, bc_pad, rwt_pad, rb_enc, *, N_pad, TN, Tp, T):
    KHE = im_flat.shape[1]
    kernel = functools.partial(_encoder_kernel, TN=TN, Tp=Tp, T=T)
    return pl.pallas_call(
        kernel,
        out_shape=(jax.ShapeDtypeStruct((N_pad, CP), jnp.float32),
                   jax.ShapeDtypeStruct((N_pad, NCP), jnp.float32)),
        grid_spec=pltpu.PrefetchScalarGridSpec(
            num_scalar_prefetch=0,
            grid=(N_pad // TN,),
            in_specs=[
                pl.BlockSpec((TN * Tp, KHE), lambda i: (i, 0)),
                pl.BlockSpec((KHE, CP), lambda i: (0, 0)),
                pl.BlockSpec((1, CP), lambda i: (0, 0)),
                pl.BlockSpec((CP, NCP), lambda i: (0, 0)),
                pl.BlockSpec((1, NCP), lambda i: (0, 0)),
            ],
            out_specs=[
                pl.BlockSpec((TN, CP), lambda i: (i, 0)),
                pl.BlockSpec((TN, NCP), lambda i: (i, 0)),
            ],
        ),
        compiler_params=pltpu.CompilerParams(
            dimension_semantics=("parallel",)),
    )(im_flat, w_flat, bc_pad, rwt_pad, rb_enc)


# ----------------------------------------------------------------------------
# Kernel 2: per-bag class-wise attention + softmax diag, one bag per grid step.
#   alpha = softmax(batch_e[beg:end]^T, axis=1)   (NC, n_i)
#   bag_rep = alpha @ sent[beg:end]               (NC, C)
#   o = softmax(bag_rep @ RW^T + Rb, axis=1); out[b] = diag(o)
# ----------------------------------------------------------------------------
def _bag_kernel(off_ref, e_ref, sent_ref, rwt_ref, rb_ref, out_ref, *, MAX_BAG):
    b = pl.program_id(0)
    beg = off_ref[b]
    n = off_ref[b + 1] - beg

    # Only this bag's rows (MAX_BAG padded slice; tail masked below).
    e_b = e_ref[pl.ds(beg, MAX_BAG), :]          # (MAX_BAG, NCP)
    s_b = sent_ref[pl.ds(beg, MAX_BAG), :]       # (MAX_BAG, CP)

    et = e_b.T                                   # (NCP, MAX_BAG) small transpose
    jidx = lax.broadcasted_iota(jnp.int32, (1, MAX_BAG), 1)
    valid = jidx < n                             # (1, MAX_BAG)
    we = jnp.where(valid, et, jnp.float32(-1e30))
    m = jnp.max(we, axis=1, keepdims=True)
    p = jnp.where(valid, jnp.exp(we - m), 0.0)
    denom = jnp.maximum(jnp.sum(p, axis=1, keepdims=True), 1e-30)  # empty-bag guard
    alpha = p * pl.reciprocal(denom, approx=True)                   # (NCP, MAX_BAG)

    bag_rep = jnp.dot(alpha, s_b, preferred_element_type=jnp.float32)   # (NCP, CP)
    # Padded classes carry a -1e30 bias so they vanish from the softmax.
    logits = jnp.dot(bag_rep, rwt_ref[...],
                     preferred_element_type=jnp.float32) + rb_ref[...]  # (NCP, NCP)

    m2 = jnp.max(logits, axis=1, keepdims=True)
    ex = jnp.exp(logits - m2)
    sm = ex / jnp.sum(ex, axis=1, keepdims=True)  # exact normalize for the output

    # Diagonal extraction with an in-kernel iota mask; reduce over rows so the
    # result lands lane-dense as a (1, NCP) row, broadcast to a dense (8, NCP)
    # store (no sublane-masked vst).
    ridx = lax.broadcasted_iota(jnp.int32, (NCP, NCP), 0)
    cidx = lax.broadcasted_iota(jnp.int32, (NCP, NCP), 1)
    diag = jnp.where(ridx == cidx, sm, 0.0)
    row = jnp.sum(diag, axis=0, keepdims=True)                          # (1, NCP)
    out_ref[...] = jnp.broadcast_to(row, (OUT_SUB, NCP))


def bag_attention(offsets, e_res, sent_res, rwt_pad, rb_dec, *, max_bag):
    B = offsets.shape[0] - 1
    N_res = e_res.shape[0]
    kernel = functools.partial(_bag_kernel, MAX_BAG=max_bag)
    full2 = lambda b, off: (0, 0)
    out = pl.pallas_call(
        kernel,
        out_shape=jax.ShapeDtypeStruct((B * OUT_SUB, NCP), jnp.float32),
        grid_spec=pltpu.PrefetchScalarGridSpec(
            num_scalar_prefetch=1,
            grid=(B,),
            in_specs=[
                pl.BlockSpec((N_res, NCP), full2),
                pl.BlockSpec((N_res, CP), full2),
                pl.BlockSpec((CP, NCP), full2),
                pl.BlockSpec((1, NCP), full2),
            ],
            out_specs=pl.BlockSpec((OUT_SUB, NCP), lambda b, off: (b, 0)),
        ),
        compiler_params=pltpu.CompilerParams(
            dimension_semantics=("parallel",)),
    )(offsets, e_res, sent_res, rwt_pad, rb_dec)
    return out.reshape(B, OUT_SUB, NCP)[:, 0, :]


# ----------------------------------------------------------------------------
# Model wrapper (decode_CNN path; Model.forward itself is `pass` in the source)
# ----------------------------------------------------------------------------
@functools.partial(jax.jit, static_argnames=("max_bag",))
def _decode_cnn_jit(params, x, ldist, rdist, offsets, max_bag):
    # Embedding lookups + concat (glue, plain JAX).
    x_e = jnp.take(params["Wv"], x, axis=0)        # (N, S, 50)
    l_e = jnp.take(params["pf1"], ldist, axis=0)   # (N, S, 5)
    r_e = jnp.take(params["pf2"], rdist, axis=0)   # (N, S, 5)
    emb = jnp.concatenate([x_e, l_e, r_e], axis=-1).astype(jnp.float32)  # (N,S,60)

    N, S, E = emb.shape
    Wc, bc = params["Wc"], params["bc"]
    C, KH, _ = Wc.shape
    RW, Rb = params["RW"], params["Rb"]
    NC = RW.shape[0]

    T = S - KH + 1
    Tp = _round_up(T, 8)
    KHE = KH * E
    KHE_pad = _round_up(KHE, 128)
    TN = min(128, _round_up(N, 8))     # sentences per encoder tile
    N_pad = _round_up(N, TN)

    # im2col: fold the KH time shifts into the matmul (lane/sublane dense).
    windows = [emb[:, dh:dh + T, :] for dh in range(KH)]
    im = jnp.concatenate(windows, axis=-1)                         # (N, T, KH*E)
    im = jnp.pad(im, ((0, N_pad - N), (0, Tp - T), (0, KHE_pad - KHE)))
    im_flat = im.reshape(N_pad * Tp, KHE_pad)

    # w_flat[dh*E + e, c] = Wc[c, dh, e]   (zero-padded for c >= C)
    w = jnp.transpose(Wc, (1, 2, 0)).reshape(KHE, C)
    w_flat = jnp.pad(w, ((0, KHE_pad - KHE), (0, CP - C)))
    bc_pad = jnp.pad(bc, (0, CP - C)).reshape(1, CP)

    rw_pad = jnp.pad(RW, ((0, NCP - NC), (0, CP - C)))             # (NCp, Cp)
    rwt_pad = rw_pad.T                                             # (Cp, NCp)
    rb_enc = jnp.pad(Rb, (0, NCP - NC)).reshape(1, NCP)            # pad -> 0
    rb_dec = jnp.concatenate(
        [Rb, jnp.full((NCP - NC,), -1e30, jnp.float32)]).reshape(1, NCP)

    sent_pad, e_pad = encode_sentences(im_flat, w_flat, bc_pad, rwt_pad, rb_enc,
                                       N_pad=N_pad, TN=TN, Tp=Tp, T=T)

    # Extra zero rows so the in-kernel pl.ds(beg, MAX_BAG) slice never runs OOB.
    N_res = N_pad + max_bag
    e_res = jnp.pad(e_pad, ((0, N_res - N_pad), (0, 0)))
    sent_res = jnp.pad(sent_pad, ((0, N_res - N_pad), (0, 0)))

    out = bag_attention(offsets, e_res, sent_res, rwt_pad, rb_dec, max_bag=max_bag)
    return out[:, :NC]


def model_decode_cnn(params, x, ldist, rdist, offsets_list):
    offsets = jnp.asarray(offsets_list, dtype=jnp.int32)
    sizes = [int(offsets_list[i + 1]) - int(offsets_list[i])
             for i in range(len(offsets_list) - 1)]
    max_bag = _round_up(max(max(sizes), 1), 8)
    return _decode_cnn_jit(params, x, ldist, rdist, offsets, max_bag)


def reference_decode_cnn(params, x, ldist, rdist, offsets_list):
    x_e = jnp.take(params["Wv"], x, axis=0)
    l_e = jnp.take(params["pf1"], ldist, axis=0)
    r_e = jnp.take(params["pf2"], rdist, axis=0)
    emb = jnp.concatenate([x_e, l_e, r_e], axis=-1).astype(jnp.float32)

    Wc, bc, RW, Rb = params["Wc"], params["bc"], params["RW"], params["Rb"]
    N, S, E = emb.shape
    C, KH, _ = Wc.shape
    T = S - KH + 1
    conv = jnp.zeros((N, T, C), jnp.float32) + bc.reshape(1, 1, C)
    for dh in range(KH):
        conv = conv + jnp.einsum("nte,ce->ntc", emb[:, dh:dh + T, :], Wc[:, dh, :])
    sent = jnp.tanh(conv.max(axis=1))
    e = sent @ RW.T + Rb
    outs = []
    for i in range(len(offsets_list) - 1):
        beg, end = offsets_list[i], offsets_list[i + 1]
        alpha = jax.nn.softmax(e[beg:end].T, axis=1)
        bag = alpha @ sent[beg:end]
        o = jax.nn.softmax(bag @ RW.T + Rb, axis=1)
        outs.append(jnp.diag(o))
    return jnp.stack(outs)


if __name__ == "__main__":
    # Small, module-consistent shapes.
    word_length, feature_length = 30, 20
    word_size, feature_size = 50, 5
    cnn_layers, num_classes = 32, 53
    KH = 3
    E = word_size + 2 * feature_size          # 60 == conv kernel width
    N, S = 8, 16                              # sentences, tokens
    offsets_list = [0, 3, 8]                  # 2 bags
    B = len(offsets_list) - 1

    key = jax.random.PRNGKey(0)
    ks = jax.random.split(key, 8)

    params = {
        "Wv":  jax.random.normal(ks[0], (word_length, word_size), jnp.float32) * 0.1,
        "pf1": jax.random.normal(ks[1], (feature_length, feature_size), jnp.float32) * 0.1,
        "pf2": jax.random.normal(ks[2], (feature_length, feature_size), jnp.float32) * 0.1,
        "Wc":  jax.random.normal(ks[3], (cnn_layers, KH, E), jnp.float32) * 0.05,
        "bc":  jnp.zeros((cnn_layers,), jnp.float32),           # bias zeroed in __init__
        "RW":  jax.random.uniform(ks[4], (num_classes, cnn_layers), jnp.float32,
                                  minval=-np.sqrt(6.0 / (num_classes + cnn_layers)),
                                  maxval=np.sqrt(6.0 / (num_classes + cnn_layers))),
        "Rb":  jnp.zeros((num_classes,), jnp.float32),
    }

    x = jax.random.randint(ks[5], (N, S), 0, word_length, jnp.int32)
    ldist = jax.random.randint(ks[6], (N, S), 0, feature_length, jnp.int32)
    rdist = jax.random.randint(ks[7], (N, S), 0, feature_length, jnp.int32)

    out = model_decode_cnn(params, x, ldist, rdist, offsets_list)
    out = jax.block_until_ready(out)
    assert out.shape == (B, num_classes)

    ref = jax.block_until_ready(
        reference_decode_cnn(params, x, ldist, rdist, offsets_list))
    # Tolerance accounts for pl.reciprocal(approx=True) in the alpha softmax.
    np.testing.assert_allclose(np.asarray(out), np.asarray(ref),
                               rtol=5e-3, atol=5e-4)

    # TODO(synk): Model.forward is literally `pass`; the training-loss variants
    # (cross_entropy over bags, BAGATT label-dependent branching) and the PCNN
    # path are host-side loops and are not implemented here — decode_CNN is the
    # representative inference path.
    print("KERNEL_OK")
</pallas_src>

<mosaic_0001>
module attributes {stable_mosaic.version = 11 : i64} {
  func.func @_encoder_kernel(%arg0: i32, %arg1: memref<128x256xf32, #tpu.memory_space<vmem>>, %arg2: memref<256x128xf32, #tpu.memory_space<vmem>>, %arg3: memref<1x128xf32, #tpu.memory_space<vmem>>, %arg4: memref<128x128xf32, #tpu.memory_space<vmem>>, %arg5: memref<1x128xf32, #tpu.memory_space<vmem>>, %arg6: memref<8x128xf32, #tpu.memory_space<vmem>>, %arg7: memref<8x128xf32, #tpu.memory_space<vmem>>) attributes {dimension_semantics = [#tpu.dimension_semantics<parallel>], iteration_bounds = array<i64: 1>, scalar_prefetch = 0 : i64, scratch_operands = 0 : i64, tpu.core_type = #tpu.core_type<tc>, window_params = [{transform_indices = @transform_0, window_bounds = array<i64: 128, 256>}, {pipeline_mode = #tpu.pipeline_mode<synchronous>, transform_indices = @transform_1, window_bounds = array<i64: 256, 128>}, {pipeline_mode = #tpu.pipeline_mode<synchronous>, transform_indices = @transform_2, window_bounds = array<i64: 1, 128>}, {pipeline_mode = #tpu.pipeline_mode<synchronous>, transform_indices = @transform_3, window_bounds = array<i64: 128, 128>}, {pipeline_mode = #tpu.pipeline_mode<synchronous>, transform_indices = @transform_4, window_bounds = array<i64: 1, 128>}, {transform_indices = @transform_5, window_bounds = array<i64: 8, 128>}, {transform_indices = @transform_6, window_bounds = array<i64: 8, 128>}]} {
    %c0 = arith.constant 0 : index
    %c0_0 = arith.constant 0 : index
    %0 = vector.load %arg1[%c0, %c0_0] : memref<128x256xf32, #tpu.memory_space<vmem>>, vector<128x256xf32>
    %c0_1 = arith.constant 0 : index
    %c0_2 = arith.constant 0 : index
    %1 = vector.load %arg2[%c0_1, %c0_2] : memref<256x128xf32, #tpu.memory_space<vmem>>, vector<256x128xf32>
    %cst = arith.constant dense<0.000000e+00> : vector<128x128xf32>
    %2 = tpu.matmul %0, %1, %cst {dimension_numbers = #tpu.dot_dimension_numbers<[1], [0], [0], [1], [0, 0, 1, 1], [], []>} : vector<128x256xf32>, vector<256x128xf32>, vector<128x128xf32> -> vector<128x128xf32>
    %3 = vector.shape_cast %2 : vector<128x128xf32> to vector<8x16x128xf32>
    %4 = tpu.iota {dimensions = array<i32: 1>} : vector<1x16x128xi32>
    %c14_i32 = arith.constant 14 : i32
    %5 = vector.broadcast %c14_i32 : i32 to vector<1x16x128xi32>
    %6 = arith.cmpi slt, %4, %5 : vector<1x16x128xi32>
    %cst_3 = arith.constant -1.000000e+30 : f32
    %7 = vector.shape_cast %6 : vector<1x16x128xi1> to vector<1x16x128xi1>
    %8 = vector.broadcast %7 : vector<1x16x128xi1> to vector<8x16x128xi1>
    %9 = vector.broadcast %cst_3 : f32 to vector<8x16x128xf32>
    %10 = arith.select %8, %3, %9 : vector<8x16x128xi1>, vector<8x16x128xf32>
    %cst_4 = arith.constant dense<0xFF800000> : vector<8x128xf32>
    %11 = vector.multi_reduction <maximumf>, %10, %cst_4 [1] : vector<8x16x128xf32> to vector<8x128xf32>
    %c0_5 = arith.constant 0 : index
    %c0_6 = arith.constant 0 : index
    %12 = vector.load %arg3[%c0_5, %c0_6] : memref<1x128xf32, #tpu.memory_space<vmem>>, vector<1x128xf32>
    %13 = vector.broadcast %12 : vector<1x128xf32> to vector<8x128xf32>
    %14 = arith.addf %11, %13 : vector<8x128xf32>
    %15 = math.tanh %14 : vector<8x128xf32>
    %c0_7 = arith.constant 0 : index
    %c0_8 = arith.constant 0 : index
    %16 = vector.load %arg6[%c0_7, %c0_8] : memref<8x128xf32, #tpu.memory_space<vmem>>, vector<8x128xf32>
    tpu.vector_store %arg6[%c0_7, %c0_8], %15 {strides = array<i32>} : memref<8x128xf32, #tpu.memory_space<vmem>>, vector<8x128xf32>,
    %c0_9 = arith.constant 0 : index
    %c0_10 = arith.constant 0 : index
    %17 = vector.load %arg4[%c0_9, %c0_10] : memref<128x128xf32, #tpu.memory_space<vmem>>, vector<128x128xf32>
    %cst_11 = arith.constant dense<0.000000e+00> : vector<8x128xf32>
    %18 = tpu.matmul %15, %17, %cst_11 {dimension_numbers = #tpu.dot_dimension_numbers<[1], [0], [0], [1], [0, 0, 1, 1], [], []>} : vector<8x128xf32>, vector<128x128xf32>, vector<8x128xf32> -> vector<8x128xf32>
    %c0_12 = arith.constant 0 : index
    %c0_13 = arith.constant 0 : index
    %19 = vector.load %arg5[%c0_12, %c0_13] : memref<1x128xf32, #tpu.memory_space<vmem>>, vector<1x128xf32>
    %20 = vector.broadcast %19 : vector<1x128xf32> to vector<8x128xf32>
    %21 = arith.addf %18, %20 : vector<8x128xf32>
    %c0_14 = arith.constant 0 : index
    %c0_15 = arith.constant 0 : index
    %22 = vector.load %arg7[%c0_14, %c0_15] : memref<8x128xf32, #tpu.memory_space<vmem>>, vector<8x128xf32>
    tpu.vector_store %arg7[%c0_14, %c0_15], %21 {strides = array<i32>} : memref<8x128xf32, #tpu.memory_space<vmem>>, vector<8x128xf32>,
    return
  }
  func.func @transform_0(%arg0: i32) -> (i32, i32) {
    %c0_i32 = arith.constant 0 : i32
    %c0_i32_0 = arith.constant 0 : i32
    return %arg0, %c0_i32 : i32, i32
  }
  func.func @transform_1(%arg0: i32) -> (i32, i32) {
    %c0_i32 = arith.constant 0 : i32
    %c0_i32_0 = arith.constant 0 : i32
    %c0_i32_1 = arith.constant 0 : i32
    return %c0_i32, %c0_i32_0 : i32, i32
  }
  func.func @transform_2(%arg0: i32) -> (i32, i32) {
    %c0_i32 = arith.constant 0 : i32
    %c0_i32_0 = arith.constant 0 : i32
    %c0_i32_1 = arith.constant 0 : i32
    return %c0_i32, %c0_i32_0 : i32, i32
  }
  func.func @transform_3(%arg0: i32) -> (i32, i32) {
    %c0_i32 = arith.constant 0 : i32
    %c0_i32_0 = arith.constant 0 : i32
    %c0_i32_1 = arith.constant 0 : i32
    return %c0_i32, %c0_i32_0 : i32, i32
  }
  func.func @transform_4(%arg0: i32) -> (i32, i32) {
    %c0_i32 = arith.constant 0 : i32
    %c0_i32_0 = arith.constant 0 : i32
    %c0_i32_1 = arith.constant 0 : i32
    return %c0_i32, %c0_i32_0 : i32, i32
  }
  func.func @transform_5(%arg0: i32) -> (i32, i32) {
    %c0_i32 = arith.constant 0 : i32
    %c0_i32_0 = arith.constant 0 : i32
    return %arg0, %c0_i32 : i32, i32
  }
  func.func @transform_6(%arg0: i32) -> (i32, i32) {
    %c0_i32 = arith.constant 0 : i32
    %c0_i32_0 = arith.constant 0 : i32
    return %arg0, %c0_i32 : i32, i32
  }
}

module attributes {stable_mosaic.version = 11 : i64} {
  func.func @_bag_kernel(%arg0: i32, %arg1: memref<3xi32, #tpu.memory_space<smem>>, %arg2: memref<16x128xf32, #tpu.memory_space<vmem>>, %arg3: memref<16x128xf32, #tpu.memory_space<vmem>>, %arg4: memref<128x128xf32, #tpu.memory_space<vmem>>, %arg5: memref<1x128xf32, #tpu.memory_space<vmem>>, %arg6: memref<8x128xf32, #tpu.memory_space<vmem>>) attributes {dimension_semantics = [#tpu.dimension_semantics<parallel>], iteration_bounds = array<i64: 2>, scalar_prefetch = 1 : i64, scratch_operands = 0 : i64, tpu.core_type = #tpu.core_type<tc>, window_params = [{pipeline_mode = #tpu.pipeline_mode<synchronous>, transform_indices = @transform_0, window_bounds = array<i64: 16, 128>}, {pipeline_mode = #tpu.pipeline_mode<synchronous>, transform_indices = @transform_1, window_bounds = array<i64: 16, 128>}, {pipeline_mode = #tpu.pipeline_mode<synchronous>, transform_indices = @transform_2, window_bounds = array<i64: 128, 128>}, {pipeline_mode = #tpu.pipeline_mode<synchronous>, transform_indices = @transform_3, window_bounds = array<i64: 1, 128>}, {transform_indices = @transform_4, window_bounds = array<i64: 8, 128>}]} {
    %0 = arith.index_cast %arg0 : i32 to index
    %1 = memref.load %arg1[%0] : memref<3xi32, #tpu.memory_space<smem>>
    %c1_i32 = arith.constant 1 : i32
    %2 = arith.addi %arg0, %c1_i32 : i32
    %3 = arith.index_cast %2 : i32 to index
    %4 = memref.load %arg1[%3] : memref<3xi32, #tpu.memory_space<smem>>
    %5 = arith.subi %4, %1 : i32
    %6 = arith.index_cast %1 : i32 to index
    %c0 = arith.constant 0 : index
    %7 = vector.load %arg2[%6, %c0] : memref<16x128xf32, #tpu.memory_space<vmem>>, vector<8x128xf32>
    %8 = arith.index_cast %1 : i32 to index
    %c0_0 = arith.constant 0 : index
    %9 = vector.load %arg3[%8, %c0_0] : memref<16x128xf32, #tpu.memory_space<vmem>>, vector<8x128xf32>
    %10 = tpu.transpose %7, [1, 0] : vector<8x128xf32> -> vector<128x8xf32>
    %11 = tpu.iota {dimensions = array<i32: 1>} : vector<1x8xi32>
    %12 = vector.broadcast %5 : i32 to vector<1x8xi32>
    %13 = arith.cmpi slt, %11, %12 : vector<1x8xi32>
    %cst = arith.constant -1.000000e+30 : f32
    %14 = vector.shape_cast %13 : vector<1x8xi1> to vector<1x8xi1>
    %15 = vector.broadcast %14 : vector<1x8xi1> to vector<128x8xi1>
    %16 = vector.broadcast %cst : f32 to vector<128x8xf32>
    %17 = arith.select %15, %10, %16 : vector<128x8xi1>, vector<128x8xf32>
    %cst_1 = arith.constant dense<0xFF800000> : vector<128xf32>
    %18 = vector.multi_reduction <maximumf>, %17, %cst_1 [1] : vector<128x8xf32> to vector<128xf32>
    %19 = vector.shape_cast %18 : vector<128xf32> to vector<128x1xf32>
    %20 = vector.broadcast %19 : vector<128x1xf32> to vector<128x8xf32>
    %21 = arith.subf %17, %20 : vector<128x8xf32>
    %22 = math.exp %21 : vector<128x8xf32>
    %cst_2 = arith.constant 0.000000e+00 : f32
    %23 = vector.shape_cast %13 : vector<1x8xi1> to vector<1x8xi1>
    %24 = vector.broadcast %23 : vector<1x8xi1> to vector<128x8xi1>
    %25 = vector.broadcast %cst_2 : f32 to vector<128x8xf32>
    %26 = arith.select %24, %22, %25 : vector<128x8xi1>, vector<128x8xf32>
    %cst_3 = arith.constant dense<0.000000e+00> : vector<128xf32>
    %27 = vector.multi_reduction <add>, %26, %cst_3 [1] : vector<128x8xf32> to vector<128xf32>
    %28 = vector.shape_cast %27 : vector<128xf32> to vector<128x1xf32>
    %cst_4 = arith.constant 1.000000e-30 : f32
    %29 = vector.broadcast %cst_4 : f32 to vector<128x1xf32>
    %30 = arith.maximumf %28, %29 : vector<128x1xf32>
    %31 = tpu.reciprocal %30 {approx = true} : vector<128x1xf32> -> vector<128x1xf32>
    %32 = vector.broadcast %31 : vector<128x1xf32> to vector<128x8xf32>
    %33 = arith.mulf %26, %32 : vector<128x8xf32>
    %cst_5 = arith.constant dense<0.000000e+00> : vector<128x128xf32>
    %34 = tpu.matmul %33, %9, %cst_5 {dimension_numbers = #tpu.dot_dimension_numbers<[1], [0], [0], [1], [0, 0, 1, 1], [], []>} : vector<128x8xf32>, vector<8x128xf32>, vector<128x128xf32> -> vector<128x128xf32>
    %c0_6 = arith.constant 0 : index
    %c0_7 = arith.constant 0 : index
    %35 = vector.load %arg4[%c0_6, %c0_7] : memref<128x128xf32, #tpu.memory_space<vmem>>, vector<128x128xf32>
    %cst_8 = arith.constant dense<0.000000e+00> : vector<128x128xf32>
    %36 = tpu.matmul %34, %35, %cst_8 {dimension_numbers = #tpu.dot_dimension_numbers<[1], [0], [0], [1], [0, 0, 1, 1], [], []>} : vector<128x128xf32>, vector<128x128xf32>, vector<128x128xf32> -> vector<128x128xf32>
    %c0_9 = arith.constant 0 : index
    %c0_10 = arith.constant 0 : index
    %37 = vector.load %arg5[%c0_9, %c0_10] : memref<1x128xf32, #tpu.memory_space<vmem>>, vector<1x128xf32>
    %38 = vector.broadcast %37 : vector<1x128xf32> to vector<128x128xf32>
    %39 = arith.addf %36, %38 : vector<128x128xf32>
    %cst_11 = arith.constant dense<0xFF800000> : vector<128xf32>
    %40 = vector.multi_reduction <maximumf>, %39, %cst_11 [1] : vector<128x128xf32> to vector<128xf32>
    %41 = vector.shape_cast %40 : vector<128xf32> to vector<128x1xf32>
    %42 = vector.broadcast %41 : vector<128x1xf32> to vector<128x128xf32>
    %43 = arith.subf %39, %42 : vector<128x128xf32>
    %44 = math.exp %43 : vector<128x128xf32>
    %cst_12 = arith.constant dense<0.000000e+00> : vector<128xf32>
    %45 = vector.multi_reduction <add>, %44, %cst_12 [1] : vector<128x128xf32> to vector<128xf32>
    %46 = vector.shape_cast %45 : vector<128xf32> to vector<128x1xf32>
    %47 = vector.broadcast %46 : vector<128x1xf32> to vector<128x128xf32>
    %48 = arith.divf %44, %47 : vector<128x128xf32>
    %49 = tpu.iota {dimensions = array<i32: 0>} : vector<128x128xi32>
    %50 = tpu.iota {dimensions = array<i32: 1>} : vector<128x128xi32>
    %51 = arith.cmpi eq, %49, %50 : vector<128x128xi32>
    %cst_13 = arith.constant 0.000000e+00 : f32
    %52 = vector.broadcast %cst_13 : f32 to vector<128x128xf32>
    %53 = arith.select %51, %48, %52 : vector<128x128xi1>, vector<128x128xf32>
    %cst_14 = arith.constant dense<0.000000e+00> : vector<128xf32>
    %54 = vector.multi_reduction <add>, %53, %cst_14 [0] : vector<128x128xf32> to vector<128xf32>
    %55 = vector.shape_cast %54 : vector<128xf32> to vector<1x128xf32>
    %56 = vector.shape_cast %55 : vector<1x128xf32> to vector<1x128xf32>
    %57 = vector.broadcast %56 : vector<1x128xf32> to vector<8x128xf32>
    %c0_15 = arith.constant 0 : index
    %c0_16 = arith.constant 0 : index
    %58 = vector.load %arg6[%c0_15, %c0_16] : memref<8x128xf32, #tpu.memory_space<vmem>>, vector<8x128xf32>
    tpu.vector_store %arg6[%c0_15, %c0_16], %57 {strides = array<i32>} : memref<8x128xf32, #tpu.memory_space<vmem>>, vector<8x128xf32>,
    return
  }
  func.func @transform_0(%arg0: i32, %arg1: memref<3xi32, #tpu.memory_space<smem>>) -> (i32, i32) {
    %c0_i32 = arith.constant 0 : i32
    %c0_i32_0 = arith.constant 0 : i32
    %c0_i32_1 = arith.constant 0 : i32
    return %c0_i32, %c0_i32_0 : i32, i32
  }
  func.func @transform_1(%arg0: i32, %arg1: memref<3xi32, #tpu.memory_space<smem>>) -> (i32, i32) {
    %c0_i32 = arith.constant 0 : i32
    %c0_i32_0 = arith.constant 0 : i32
    %c0_i32_1 = arith.constant 0 : i32
    return %c0_i32, %c0_i32_0 : i32, i32
  }
  func.func @transform_2(%arg0: i32, %arg1: memref<3xi32, #tpu.memory_space<smem>>) -> (i32, i32) {
    %c0_i32 = arith.constant 0 : i32
    %c0_i32_0 = arith.constant 0 : i32
    %c0_i32_1 = arith.constant 0 : i32
    return %c0_i32, %c0_i32_0 : i32, i32
  }
  func.func @transform_3(%arg0: i32, %arg1: memref<3xi32, #tpu.memory_space<smem>>) -> (i32, i32) {
    %c0_i32 = arith.constant 0 : i32
    %c0_i32_0 = arith.constant 0 : i32
    %c0_i32_1 = arith.constant 0 : i32
    return %c0_i32, %c0_i32_0 : i32, i32
  }
  func.func @transform_4(%arg0: i32, %arg1: memref<3xi32, #tpu.memory_space<smem>>) -> (i32, i32) {
    %c0_i32 = arith.constant 0 : i32
    %c0_i32_0 = arith.constant 0 : i32
    return %arg0, %c0_i32 : i32, i32
  }
}

</mosaic_0001>

<llo_original>
// kernel: _decode_cnn_jit.2
$region0: #{_decode_cnn_jit.2}
  #allocation0 [shape = 'u32[]', space=smem, size = 0x4, offset = 0x4, fixed_abs, tag = 'smem constant byte address 0x4 - core index']
  #allocation1 [shape = 'u32[144,128]{1,0:T(1,128)}', space=vmem, size = 0x12000, scoped, tag = 'internal scratch']
  %s0 = inlined_call_operand.vmem [shape: f32[128,256], index: 0, kind: input, shape index: {}]
  %s1 = inlined_call_operand.vmem [shape: f32[256,128], index: 1, kind: input, shape index: {}]
  %s2 = inlined_call_operand.vmem [shape: f32[1,128], index: 2, kind: input, shape index: {}]
  %s3 = inlined_call_operand.vmem [shape: f32[128,128], index: 3, kind: input, shape index: {}]
  %s4 = inlined_call_operand.vmem [shape: f32[1,128], index: 4, kind: input, shape index: {}]
  %s5 = inlined_call_operand.vmem [shape: f32[8,128], index: 5, kind: output, shape index: {0}]
  %s6 = inlined_call_operand.vmem [shape: f32[8,128], index: 6, kind: output, shape index: {1}]
  %7 = xla_tuple %s5, %s6
  %s8 = sld [smem:[#allocation0]]
  $region38: #{_decode_cnn_jit.2} parent=0
    _
  %s10 = ssub.s32 1, %s8
  %s11 = scalar_select 0, %s10, %s8
  // Predicated region
  $region2: #{_decode_cnn_jit.2} parent=0 // pred_check
    _
  $region3: #{_decode_cnn_jit.2} parent=0 // pred_check_branch
    %13 = sbr.rel (0) target = $region5
  $region4: #{_decode_cnn_jit.2} parent=0 // pred_region
    _
  $region5: #{_decode_cnn_jit.2} parent=0 // pred_fallthru
    _
  // Predicated region
  $region6: #{_decode_cnn_jit.2} parent=0 // pred_check
    _
  $region7: #{_decode_cnn_jit.2} parent=0 // pred_check_branch
    %15 = sbr.rel (0) target = $region9
  $region8: #{_decode_cnn_jit.2} parent=0 // pred_region
    _
  $region9: #{_decode_cnn_jit.2} parent=0 // pred_fallthru
    _
  // Predicated region
  $region10: #{_decode_cnn_jit.2} parent=0 // pred_check
    _
  $region11: #{_decode_cnn_jit.2} parent=0 // pred_check_branch
    %17 = sbr.rel (0) target = $region13
  $region12: #{_decode_cnn_jit.2} parent=0 // pred_region
    _
  $region13: #{_decode_cnn_jit.2} parent=0 // pred_fallthru
    _
  // Predicated region
  $region14: #{_decode_cnn_jit.2} parent=0 // pred_check
    _
  $region15: #{_decode_cnn_jit.2} parent=0 // pred_check_branch
    %19 = sbr.rel (0) target = $region17
  $region16: #{_decode_cnn_jit.2} parent=0 // pred_region
    _
  $region17: #{_decode_cnn_jit.2} parent=0 // pred_fallthru
    _
  // Predicated region
  $region18: #{_decode_cnn_jit.2} parent=0 // pred_check
    _
  $region19: #{_decode_cnn_jit.2} parent=0 // pred_check_branch
    %21 = sbr.rel (0) target = $region21
  $region20: #{_decode_cnn_jit.2} parent=0 // pred_region
    _
  $region21: #{_decode_cnn_jit.2} parent=0 // pred_fallthru
    _
  %v22 = vld [vmem:[%s0] sm:$0xff]
  %v23 = vld [vmem:[%s0 + $0x8] sm:$0xff]
  %v24 = vld [vmem:[%s0 + $0x10] sm:$0xff]
  %v25 = vld [vmem:[%s0 + $0x18] sm:$0xff]
  %v26 = vld [vmem:[%s0 + $0x20] sm:$0xff]
  %v27 = vld [vmem:[%s0 + $0x28] sm:$0xff]
  %v28 = vld [vmem:[%s0 + $0x30] sm:$0xff]
  %v29 = vld [vmem:[%s0 + $0x38] sm:$0xff]
  %v30 = vld [vmem:[%s0 + $0x40] sm:$0xff]
  %v31 = vld [vmem:[%s0 + $0x48] sm:$0xff]
  %v32 = vld [vmem:[%s0 + $0x50] sm:$0xff]
  %v33 = vld [vmem:[%s0 + $0x58] sm:$0xff]
  %v34 = vld [vmem:[%s0 + $0x60] sm:$0xff]
  %v35 = vld [vmem:[%s0 + $0x68] sm:$0xff]
  %v36 = vld [vmem:[%s0 + $0x70] sm:$0xff]
  %v37 = vld [vmem:[%s0 + $0x78] sm:$0xff]
  %v38 = vld [vmem:[%s0 + $0x80] sm:$0xff]
  %v39 = vld [vmem:[%s0 + $0x88] sm:$0xff]
  %v40 = vld [vmem:[%s0 + $0x90] sm:$0xff]
  %v41 = vld [vmem:[%s0 + $0x98] sm:$0xff]
  %v42 = vld [vmem:[%s0 + $0xa0] sm:$0xff]
  %v43 = vld [vmem:[%s0 + $0xa8] sm:$0xff]
  %v44 = vld [vmem:[%s0 + $0xb0] sm:$0xff]
  %v45 = vld [vmem:[%s0 + $0xb8] sm:$0xff]
  %v46 = vld [vmem:[%s0 + $0xc0] sm:$0xff]
  %v47 = vld [vmem:[%s0 + $0xc8] sm:$0xff]
  %v48 = vld [vmem:[%s0 + $0xd0] sm:$0xff]
  %v49 = vld [vmem:[%s0 + $0xd8] sm:$0xff]
  %v50 = vld [vmem:[%s0 + $0xe0] sm:$0xff]
  %v51 = vld [vmem:[%s0 + $0xe8] sm:$0xff]
  %v52 = vld [vmem:[%s0 + $0xf0] sm:$0xff]
  %v53 = vld [vmem:[%s0 + $0xf8] sm:$0xff]
  %v54 = vld [vmem:[%s1] sm:$0xff]
  %v55 = vld [vmem:[%s1 + $0x8] sm:$0xff]
  %v56 = vld [vmem:[%s1 + $0x10] sm:$0xff]
  %v57 = vld [vmem:[%s1 + $0x18] sm:$0xff]
  %v58 = vld [vmem:[%s1 + $0x20] sm:$0xff]
  %v59 = vld [vmem:[%s1 + $0x28] sm:$0xff]
  %v60 = vld [vmem:[%s1 + $0x30] sm:$0xff]
  %v61 = vld [vmem:[%s1 + $0x38] sm:$0xff]
  %v62 = vld [vmem:[%s1 + $0x40] sm:$0xff]
  %v63 = vld [vmem:[%s1 + $0x48] sm:$0xff]
  %v64 = vld [vmem:[%s1 + $0x50] sm:$0xff]
  %v65 = vld [vmem:[%s1 + $0x58] sm:$0xff]
  %v66 = vld [vmem:[%s1 + $0x60] sm:$0xff]
  %v67 = vld [vmem:[%s1 + $0x68] sm:$0xff]
  %v68 = vld [vmem:[%s1 + $0x70] sm:$0xff]
  %v69 = vld [vmem:[%s1 + $0x78] sm:$0xff]
  %v70 = vld [vmem:[%s1 + $0x80] sm:$0xff]
  %v71 = vld [vmem:[%s1 + $0x88] sm:$0xff]
  %v72 = vld [vmem:[%s1 + $0x90] sm:$0xff]
  %v73 = vld [vmem:[%s1 + $0x98] sm:$0xff]
  %v74 = vld [vmem:[%s1 + $0xa0] sm:$0xff]
  %v75 = vld [vmem:[%s1 + $0xa8] sm:$0xff]
  %v76 = vld [vmem:[%s1 + $0xb0] sm:$0xff]
  %v77 = vld [vmem:[%s1 + $0xb8] sm:$0xff]
  %v78 = vld [vmem:[%s1 + $0xc0] sm:$0xff]
  %v79 = vld [vmem:[%s1 + $0xc8] sm:$0xff]
  %v80 = vld [vmem:[%s1 + $0xd0] sm:$0xff]
  %v81 = vld [vmem:[%s1 + $0xd8] sm:$0xff]
  %v82 = vld [vmem:[%s1 + $0xe0] sm:$0xff]
  %v83 = vld [vmem:[%s1 + $0xe8] sm:$0xff]
  %v84 = vld [vmem:[%s1 + $0xf0] sm:$0xff]
  %v85 = vld [vmem:[%s1 + $0xf8] sm:$0xff]
  %86 = vmatprep.subr.mxu0 0.0
  %87 = vmatpush1.msra.mxu0 %v54
  %88 = vmatprep.subr.mxu0 0.0
  %89 = vmatpush1.msra.mxu0 %v55
  %90 = vmatprep.subr.mxu0 0.0
  %91 = vmatpush1.msra.mxu0 %v56
  %92 = vmatprep.subr.mxu0 0.0
  %93 = vmatpush1.msra.mxu0 %v57
  %94 = vmatprep.subr.mxu0 0.0
  %95 = vmatpush1.msra.mxu0 %v58
  %96 = vmatprep.subr.mxu0 0.0
  %97 = vmatpush1.msra.mxu0 %v59
  %98 = vmatprep.subr.mxu0 0.0
  %99 = vmatpush1.msra.mxu0 %v60
  %100 = vmatprep.subr.mxu0 0.0
  %101 = vmatpush1.msra.mxu0 %v61
  %102 = vmatprep.subr.mxu0 0.0
  %103 = vmatpush1.msra.mxu0 %v62
  %104 = vmatprep.subr.mxu0 0.0
  %105 = vmatpush1.msra.mxu0 %v63
  %106 = vmatprep.subr.mxu0 0.0
  %107 = vmatpush1.msra.mxu0 %v64
  %108 = vmatprep.subr.mxu0 0.0
  %109 = vmatpush1.msra.mxu0 %v65
  %110 = vmatprep.subr.mxu0 0.0
  %111 = vmatpush1.msra.mxu0 %v66
  %112 = vmatprep.subr.mxu0 0.0
  %113 = vmatpush1.msra.mxu0 %v67
  %114 = vmatprep.subr.mxu0 0.0
  %115 = vmatpush1.msra.mxu0 %v68
  %116 = vmatprep.subr.mxu0 0.0
  %117 = vmatpush1.msra.mxu0 %v69
  %118 = vmatprep.subr.mxu0 0.0
  %119 = vmatpush1.msra.mxu0 %v70
  %120 = vmatprep.subr.mxu0 0.0
  %121 = vmatpush1.msra.mxu0 %v71
  %122 = vmatprep.subr.mxu0 0.0
  %123 = vmatpush1.msra.mxu0 %v72
  %124 = vmatprep.subr.mxu0 0.0
  %125 = vmatpush1.msra.mxu0 %v73
  %126 = vmatprep.subr.mxu0 0.0
  %127 = vmatpush1.msra.mxu0 %v74
  %128 = vmatprep.subr.mxu0 0.0
  %129 = vmatpush1.msra.mxu0 %v75
  %130 = vmatprep.subr.mxu0 0.0
  %131 = vmatpush1.msra.mxu0 %v76
  %132 = vmatprep.subr.mxu0 0.0
  %133 = vmatpush1.msra.mxu0 %v77
  %134 = vmatprep.subr.mxu0 0.0
  %135 = vmatpush1.msra.mxu0 %v78
  %136 = vmatprep.subr.mxu0 0.0
  %137 = vmatpush1.msra.mxu0 %v79
  %138 = vmatprep.subr.mxu0 0.0
  %139 = vmatpush1.msra.mxu0 %v80
  %140 = vmatprep.subr.mxu0 0.0
  %141 = vmatpush1.msra.mxu0 %v81
  %142 = vmatprep.subr.mxu0 0.0
  %143 = vmatpush1.msra.mxu0 %v82
  %144 = vmatprep.subr.mxu0 0.0
  %145 = vmatpush1.msra.mxu0 %v83
  %146 = vmatprep.subr.mxu0 0.0
  %147 = vmatpush1.msra.mxu0 %v84
  %148 = vmatprep.subr.mxu0 0.0
  %149 = vmatpush1.msra.mxu0 %v85
  %150 = vmatprep.mubr.f32.mxu0 %v23
  %151 = vmatmul.mubr.f32.gmra.mrb[0].mxu0 %v22
  %v152 = vpop.f32.mrb[0].mxu0
  %v153 = vadd.f32 0.0, %v152
  %v154 = vpop.f32.mrb[0].mxu0
  %155 = vmatprep.mubr.f32.mxu0 %v25
  %156 = vmatmul.mubr.f32.gmra.mrb[0].mxu0 %v24
  %v157 = vpop.f32.mrb[0].mxu0
  %v158 = vadd.f32 0.0, %v157
  %v159 = vpop.f32.mrb[0].mxu0
  %160 = vmatprep.mubr.f32.mxu0 %v27
  %161 = vmatmul.mubr.f32.gmra.mrb[0].mxu0 %v26
  %v162 = vpop.f32.mrb[0].mxu0
  %v163 = vadd.f32 0.0, %v162
  %v164 = vpop.f32.mrb[0].mxu0
  %165 = vmatprep.mubr.f32.mxu0 %v29
  %166 = vmatmul.mubr.f32.gmra.mrb[0].mxu0 %v28
  %v167 = vpop.f32.mrb[0].mxu0
  %v168 = vadd.f32 0.0, %v167
  %v169 = vpop.f32.mrb[0].mxu0
  %170 = vmatprep.mubr.f32.mxu0 %v31
  %171 = vmatmul.mubr.f32.gmra.mrb[0].mxu0 %v30
  %v172 = vpop.f32.mrb[0].mxu0
  %v173 = vadd.f32 0.0, %v172
  %v174 = vpop.f32.mrb[0].mxu0
  %175 = vmatprep.mubr.f32.mxu0 %v33
  %176 = vmatmul.mubr.f32.gmra.mrb[0].mxu0 %v32
  %v177 = vpop.f32.mrb[0].mxu0
  %v178 = vadd.f32 0.0, %v177
  %v179 = vpop.f32.mrb[0].mxu0
  %180 = vmatprep.mubr.f32.mxu0 %v35
  %181 = vmatmul.mubr.f32.gmra.mrb[0].mxu0 %v34
  %v182 = vpop.f32.mrb[0].mxu0
  %v183 = vadd.f32 0.0, %v182
  %v184 = vpop.f32.mrb[0].mxu0
  %185 = vmatprep.mubr.f32.mxu0 %v37
  %186 = vmatmul.mubr.f32.gmra.mrb[0].mxu0 %v36
  %v187 = vpop.f32.mrb[0].mxu0
  %v188 = vadd.f32 0.0, %v187
  %v189 = vpop.f32.mrb[0].mxu0
  %190 = vmatprep.mubr.f32.mxu0 %v39
  %191 = vmatmul.mubr.f32.gmra.mrb[0].mxu0 %v38
  %v192 = vpop.f32.mrb[0].mxu0
  %v193 = vadd.f32 0.0, %v192
  %v194 = vpop.f32.mrb[0].mxu0
  %195 = vmatprep.mubr.f32.mxu0 %v41
  %196 = vmatmul.mubr.f32.gmra.mrb[0].mxu0 %v40
  %v197 = vpop.f32.mrb[0].mxu0
  %v198 = vadd.f32 0.0, %v197
  %v199 = vpop.f32.mrb[0].mxu0
  %200 = vmatprep.mubr.f32.mxu0 %v43
  %201 = vmatmul.mubr.f32.gmra.mrb[0].mxu0 %v42
  %v202 = vpop.f32.mrb[0].mxu0
  %v203 = vadd.f32 0.0, %v202
  %v204 = vpop.f32.mrb[0].mxu0
  %205 = vmatprep.mubr.f32.mxu0 %v45
  %206 = vmatmul.mubr.f32.gmra.mrb[0].mxu0 %v44
  %v207 = vpop.f32.mrb[0].mxu0
  %v208 = vadd.f32 0.0, %v207
  %v209 = vpop.f32.mrb[0].mxu0
  %210 = vmatprep.mubr.f32.mxu0 %v47
  %211 = vmatmul.mubr.f32.gmra.mrb[0].mxu0 %v46
  %v212 = vpop.f32.mrb[0].mxu0
  %v213 = vadd.f32 0.0, %v212
  %v214 = vpop.f32.mrb[0].mxu0
  %215 = vmatprep.mubr.f32.mxu0 %v49
  %216 = vmatmul.mubr.f32.gmra.mrb[0].mxu0 %v48
  %v217 = vpop.f32.mrb[0].mxu0
  %v218 = vadd.f32 0.0, %v217
  %v219 = vpop.f32.mrb[0].mxu0
  %220 = vmatprep.mubr.f32.mxu0 %v51
  %221 = vmatmul.mubr.f32.gmra.mrb[0].mxu0 %v50
  %v222 = vpop.f32.mrb[0].mxu0
  %v223 = vadd.f32 0.0, %v222
  %v224 = vpop.f32.mrb[0].mxu0
  %225 = vmatprep.mubr.f32.mxu0 %v53
  %226 = vmatmul.mubr.f32.gmra.mrb[0].mxu0 %v52
  %v227 = vpop.f32.mrb[0].mxu0
  %v228 = vadd.f32 0.0, %v227
  %v229 = vpop.f32.mrb[0].mxu0
  %230 = vdwg.mxu0
  %v231 = vlaneseq
  %v232 = vshrl.u32 %v231, 7
  %v233 = vadd.s32 %v232, 8
  %vm234 = vcmp.lt.s32.totalorder %v232, 14
  %vm235 = vcmp.lt.s32.totalorder %v233, 14
  %v236 = vsel %vm234, 1, 0
  %v237 = vsel %vm235, 1, 0
  %vm238 = vcmp.eq.s32.totalorder %v236, 1
  %vm239 = vcmp.eq.s32.totalorder %v237, 1
  %v240 = vsel %vm238, %v153, -1e+30
  %v241 = vsel %vm239, %v158, -1e+30
  %v242 = vsel %vm238, %v163, -1e+30
  %v243 = vsel %vm239, %v168, -1e+30
  %v244 = vsel %vm238, %v173, -1e+30
  %v245 = vsel %vm239, %v178, -1e+30
  %v246 = vsel %vm238, %v183, -1e+30
  %v247 = vsel %vm239, %v188, -1e+30
  %v248 = vsel %vm238, %v193, -1e+30
  %v249 = vsel %vm239, %v198, -1e+30
  %v250 = vsel %vm238, %v203, -1e+30
  %v251 = vsel %vm239, %v208, -1e+30
  %v252 = vsel %vm238, %v213, -1e+30
  %v253 = vsel %vm239, %v218, -1e+30
  %v254 = vsel %vm238, %v223, -1e+30
  %v255 = vsel %vm239, %v228, -1e+30
  %v256 = vmax.f32 %v240, %v241
  %v257 = vrot.slane %v256, 4
  %v258 = vmax.f32 %v256, %v257
  %v259 = vrot.slane %v258, 2
  %v260 = vmax.f32 %v258, %v259
  %v261 = vrot.slane %v260, 1
  %v262 = vmax.f32 %v260, %v261
  %v263 = vmax.f32 %v242, %v243
  %v264 = vrot.slane %v263, 4
  %v265 = vmax.f32 %v263, %v264
  %v266 = vrot.slane %v265, 2
  %v267 = vmax.f32 %v265, %v266
  %v268 = vrot.slane %v267, 1
  %v269 = vmax.f32 %v267, %v268
  %v270 = vmax.f32 %v244, %v245
  %v271 = vrot.slane %v270, 4
  %v272 = vmax.f32 %v270, %v271
  %v273 = vrot.slane %v272, 2
  %v274 = vmax.f32 %v272, %v273
  %v275 = vrot.slane %v274, 1
  %v276 = vmax.f32 %v274, %v275
  %v277 = vmax.f32 %v246, %v247
  %v278 = vrot.slane %v277, 4
  %v279 = vmax.f32 %v277, %v278
  %v280 = vrot.slane %v279, 2
  %v281 = vmax.f32 %v279, %v280
  %v282 = vrot.slane %v281, 1
  %v283 = vmax.f32 %v281, %v282
  %v284 = vmax.f32 %v248, %v249
  %v285 = vrot.slane %v284, 4
  %v286 = vmax.f32 %v284, %v285
  %v287 = vrot.slane %v286, 2
  %v288 = vmax.f32 %v286, %v287
  %v289 = vrot.slane %v288, 1
  %v290 = vmax.f32 %v288, %v289
  %v291 = vmax.f32 %v250, %v251
  %v292 = vrot.slane %v291, 4
  %v293 = vmax.f32 %v291, %v292
  %v294 = vrot.slane %v293, 2
  %v295 = vmax.f32 %v293, %v294
  %v296 = vrot.slane %v295, 1
  %v297 = vmax.f32 %v295, %v296
  %v298 = vmax.f32 %v252, %v253
  %v299 = vrot.slane %v298, 4
  %v300 = vmax.f32 %v298, %v299
  %v301 = vrot.slane %v300, 2
  %v302 = vmax.f32 %v300, %v301
  %v303 = vrot.slane %v302, 1
  %v304 = vmax.f32 %v302, %v303
  %v305 = vmax.f32 %v254, %v255
  %v306 = vrot.slane %v305, 4
  %v307 = vmax.f32 %v305, %v306
  %v308 = vrot.slane %v307, 2
  %v309 = vmax.f32 %v307, %v308
  %v310 = vrot.slane %v309, 1
  %v311 = vmax.f32 %v309, %v310
  %v312 = vld [vmem:[%s2] sm:$0x1]
  %v314 = vlaneseq
  %v315 = vshrl.u32 %v314, 7
  %v316 = vsub.s32 0, %v315
  %v317 = vrot.slane %v312, %v316
  %v319 = vadd.f32 %v262, %v317
  %v320 = vadd.f32 %v269, %v317
  %v321 = vadd.f32 %v276, %v317
  %v322 = vadd.f32 %v283, %v317
  %v323 = vadd.f32 %v290, %v317
  %v324 = vadd.f32 %v297, %v317
  %v325 = vadd.f32 %v304, %v317
  %v326 = vadd.f32 %v311, %v317
  %v327 = vtanh.pop %v319
  %v328 = vtanh.pop %v320
  %v329 = vtanh.pop %v321
  %v330 = vtanh.pop %v322
  %v331 = vtanh.pop %v323
  %v332 = vtanh.pop %v324
  %v333 = vtanh.pop %v325
  %v334 = vtanh.pop %v326
  %v343 = vrot.slane %v328, 7
  %vm344 = vcmask 1041409
  %v345 = vsel %vm344, %v343, %v327
  %v346 = vrot.slane %v329, 6
  %vm347 = vcmask 1042434
  %v348 = vsel %vm347, %v346, %v345
  %v349 = vrot.slane %v330, 5
  %vm350 = vcmask 1043459
  %v351 = vsel %vm350, %v349, %v348
  %v352 = vrot.slane %v331, 4
  %vm353 = vcmask 1044484
  %v354 = vsel %vm353, %v352, %v351
  %v355 = vrot.slane %v332, 3
  %vm356 = vcmask 1045509
  %v357 = vsel %vm356, %v355, %v354
  %v358 = vrot.slane %v333, 2
  %vm359 = vcmask 1046534
  %v360 = vsel %vm359, %v358, %v357
  %v361 = vrot.slane %v334, 1
  %vm362 = vcmask 1047559
  %v363 = vsel %vm362, %v361, %v360
  %365 = vst [vmem:[%s5] sm:$0xff] %v363
  %v366 = vld [vmem:[%s3] sm:$0xff]
  %v367 = vld [vmem:[%s3 + $0x8] sm:$0xff]
  %v368 = vld [vmem:[%s3 + $0x10] sm:$0xff]
  %v369 = vld [vmem:[%s3 + $0x18] sm:$0xff]
  %v370 = vld [vmem:[%s3 + $0x20] sm:$0xff]
  %v371 = vld [vmem:[%s3 + $0x28] sm:$0xff]
  %v372 = vld [vmem:[%s3 + $0x30] sm:$0xff]
  %v373 = vld [vmem:[%s3 + $0x38] sm:$0xff]
  %v374 = vld [vmem:[%s3 + $0x40] sm:$0xff]
  %v375 = vld [vmem:[%s3 + $0x48] sm:$0xff]
  %v376 = vld [vmem:[%s3 + $0x50] sm:$0xff]
  %v377 = vld [vmem:[%s3 + $0x58] sm:$0xff]
  %v378 = vld [vmem:[%s3 + $0x60] sm:$0xff]
  %v379 = vld [vmem:[%s3 + $0x68] sm:$0xff]
  %v380 = vld [vmem:[%s3 + $0x70] sm:$0xff]
  %v381 = vld [vmem:[%s3 + $0x78] sm:$0xff]
  %v382 = vld [vmem:[%s4] sm:$0x1]
  %v384 = vlaneseq
  %v385 = vshrl.u32 %v384, 7
  %v386 = vsub.s32 0, %v385
  %v387 = vrot.slane %v382, %v386
  %389 = vmatprep.subr.mxu0 0.0
  %390 = vmatpush1.msra.mxu0 %v366
  %391 = vmatprep.subr.mxu0 0.0
  %392 = vmatpush1.msra.mxu0 %v367
  %393 = vmatprep.subr.mxu0 0.0
  %394 = vmatpush1.msra.mxu0 %v368
  %395 = vmatprep.subr.mxu0 0.0
  %396 = vmatpush1.msra.mxu0 %v369
  %397 = vmatprep.subr.mxu0 0.0
  %398 = vmatpush1.msra.mxu0 %v370
  %399 = vmatprep.subr.mxu0 0.0
  %400 = vmatpush1.msra.mxu0 %v371
  %401 = vmatprep.subr.mxu0 0.0
  %402 = vmatpush1.msra.mxu0 %v372
  %403 = vmatprep.subr.mxu0 0.0
  %404 = vmatpush1.msra.mxu0 %v373
  %405 = vmatprep.subr.mxu0 0.0
  %406 = vmatpush1.msra.mxu0 %v374
  %407 = vmatprep.subr.mxu0 0.0
  %408 = vmatpush1.msra.mxu0 %v375
  %409 = vmatprep.subr.mxu0 0.0
  %410 = vmatpush1.msra.mxu0 %v376
  %411 = vmatprep.subr.mxu0 0.0
  %412 = vmatpush1.msra.mxu0 %v377
  %413 = vmatprep.subr.mxu0 0.0
  %414 = vmatpush1.msra.mxu0 %v378
  %415 = vmatprep.subr.mxu0 0.0
  %416 = vmatpush1.msra.mxu0 %v379
  %417 = vmatprep.subr.mxu0 0.0
  %418 = vmatpush1.msra.mxu0 %v380
  %419 = vmatprep.subr.mxu0 0.0
  %420 = vmatpush1.msra.mxu0 %v381
  %421 = vmatprep.subr.mxu0 0.0
  %422 = vmatpush1.msra.mxu0 0.0
  %423 = vmatprep.subr.mxu0 0.0
  %424 = vmatpush1.msra.mxu0 0.0
  %425 = vmatprep.subr.mxu0 0.0
  %426 = vmatpush1.msra.mxu0 0.0
  %427 = vmatprep.subr.mxu0 0.0
  %428 = vmatpush1.msra.mxu0 0.0
  %429 = vmatprep.subr.mxu0 0.0
  %430 = vmatpush1.msra.mxu0 0.0
  %431 = vmatprep.subr.mxu0 0.0
  %432 = vmatpush1.msra.mxu0 0.0
  %433 = vmatprep.subr.mxu0 0.0
  %434 = vmatpush1.msra.mxu0 0.0
  %435 = vmatprep.subr.mxu0 0.0
  %436 = vmatpush1.msra.mxu0 0.0
  %437 = vmatprep.subr.mxu0 0.0
  %438 = vmatpush1.msra.mxu0 0.0
  %439 = vmatprep.subr.mxu0 0.0
  %440 = vmatpush1.msra.mxu0 0.0
  %441 = vmatprep.subr.mxu0 0.0
  %442 = vmatpush1.msra.mxu0 0.0
  %443 = vmatprep.subr.mxu0 0.0
  %444 = vmatpush1.msra.mxu0 0.0
  %445 = vmatprep.subr.mxu0 0.0
  %446 = vmatpush1.msra.mxu0 0.0
  %447 = vmatprep.subr.mxu0 0.0
  %448 = vmatpush1.msra.mxu0 0.0
  %449 = vmatprep.subr.mxu0 0.0
  %450 = vmatpush1.msra.mxu0 0.0
  %451 = vmatprep.subr.mxu0 0.0
  %452 = vmatpush1.msra.mxu0 0.0
  %453 = vmatprep.mubr.f32.mxu0 0.0
  %454 = vmatmul.mubr.f32.gmra.mrb[0].mxu0 %v363
  %v455 = vpop.f32.mrb[0].mxu0
  %v456 = vadd.f32 %v387, %v455
  %v457 = vpop.f32.mrb[0].mxu0
  %458 = vdwg.mxu0
  %459 = vst [vmem:[%s6] sm:$0xff] %v456
  // Predicated region
  $region22: #{_decode_cnn_jit.2} parent=0 // pred_check
    _
  $region23: #{_decode_cnn_jit.2} parent=0 // pred_check_branch
    %461 = sbr.rel (0) target = $region25
  $region24: #{_decode_cnn_jit.2} parent=0 // pred_region
    _
  $region25: #{_decode_cnn_jit.2} parent=0 // pred_fallthru
    _
  // Predicated region
  $region26: #{_decode_cnn_jit.2} parent=0 // pred_check
    _
  $region27: #{_decode_cnn_jit.2} parent=0 // pred_check_branch
    %463 = sbr.rel (0) target = $region29
  $region28: #{_decode_cnn_jit.2} parent=0 // pred_region
    _
  $region29: #{_decode_cnn_jit.2} parent=0 // pred_fallthru
    _
  // Predicated region
  $region30: #{_decode_cnn_jit.2} parent=0 // pred_check
    _
  $region31: #{_decode_cnn_jit.2} parent=0 // pred_check_branch
    %465 = sbr.rel (0) target = $region33
  $region32: #{_decode_cnn_jit.2} parent=0 // pred_region
    _
  $region33: #{_decode_cnn_jit.2} parent=0 // pred_fallthru
    _
  // Predicated region
  $region34: #{_decode_cnn_jit.2} parent=0 // pred_check
    _
  $region35: #{_decode_cnn_jit.2} parent=0 // pred_check_branch
    %467 = sbr.rel (0) target = $region37
  $region36: #{_decode_cnn_jit.2} parent=0 // pred_region
    _
  $region37: #{_decode_cnn_jit.2} parent=0 // pred_fallthru
    _

// kernel: _decode_cnn_jit.3
$region0: #{_decode_cnn_jit.3}
  #allocation0 [shape = 'u32[]', space=smem, size = 0x4, offset = 0x4, fixed_abs, tag = 'smem constant byte address 0x4 - core index']
  #allocation1 [shape = 'u32[144,128]{1,0:T(1,128)}', space=vmem, size = 0x12000, scoped, tag = 'internal scratch']
  #allocation2 [shape = 's32[1]{0}', space=sflag, size = 0x4, scoped, tag = 'scoped memory for _decode_cnn_jit.3']
  #allocation3 [shape = 'u8[512]{0}', space=smem, size = 0x200, scoped, tag = 'prefetched SMEM operand 0']
  %s0 = inlined_call_operand.vmem [shape: s32[3], index: 0, kind: input, shape index: {}]
  %s1 = inlined_call_operand.vmem [shape: f32[16,128], index: 1, kind: input, shape index: {}]
  %s2 = inlined_call_operand.vmem [shape: f32[16,128], index: 2, kind: input, shape index: {}]
  %s3 = inlined_call_operand.vmem [shape: f32[128,128], index: 3, kind: input, shape index: {}]
  %s4 = inlined_call_operand.vmem [shape: f32[1,128], index: 4, kind: input, shape index: {}]
  %s5 = inlined_call_operand.vmem [shape: f32[16,128], index: 5, kind: output, shape index: {}]
  %s6 = sld [smem:[#allocation0]]
  $region49: #{_decode_cnn_jit.3} parent=0
    _
  %s8 = ssub.s32 1, %s6
  %s9 = scalar_select 0, %s8, %s6
  %s10 = sshll.u32 %s0, 4
  %s11 = int_to_ptr.vmem [resolvable:$true] %s10
  %13 = dma.vmem_to_smem %s11, 16, [#allocation3], [#allocation2]
  %14 = dma.done [#allocation2], 16
  %15 = sfence
  loop: start=0, step=1, limit=4
  $region2: #{_decode_cnn_jit.3} parent=0 // loop_pre_header
    _
  $region3: #{_decode_cnn_jit.3} parent=0 // loop_header
    %s17 = sphi 0, %s21
    %p18 = scmp.ge.s32.totalorder %s17, 4
    %s25 = sphi 0, %s25
    %s27 = sphi 0, %s25
    %s28 = sphi 0, %s27
    %s42 = sphi 0, %s28
    %s46 = sphi 0, %s46
    %s48 = sphi 0, %s46
    %s49 = sphi 0, %s48
    %s63 = sphi 0, %s49
    %s67 = sphi 0, %s67
    %s69 = sphi 0, %s67
    %s70 = sphi 0, %s69
    %s84 = sphi 0, %s70
    %s88 = sphi 0, %s88
    %s90 = sphi 0, %s88
    %s91 = sphi 0, %s90
    %s105 = sphi 0, %s91
    %s111 = sphi 0, %s113
    %s114 = sphi 0, %s111
    %s115 = sphi 0, %s114
    %s131 = sphi 0, %s115
  $region4: #{_decode_cnn_jit.3} parent=0 // loop_header_branch
    %20 = sbr.rel (%p18) target = $region8
  $region5: #{_decode_cnn_jit.3} parent=0 // loop_body
    %s22 = ssub.s32 %s17, 1
    %s23 = ssub.s32 %s17, 2
    %s24 = sadd.s32 %s17, 1
    %s26 = sadd.s32 %s25, 1
    %p29 = scmp.eq.s32.totalorder %s17, 1
    %p30 = scmp.ne.s32.totalorder %s25, %s27
    %p31 = scmp.eq.s32.totalorder %s17, 0
    %p32 = por %p30, %p31
    %p33 = scmp.ne.s32.totalorder %s25, %s27
    %p34 = scmp.eq.s32.totalorder %s22, 1
    %p35 = por %p33, %p34
    %p36 = scmp.ne.s32.totalorder %s27, %s28
    %p37 = scmp.eq.s32.totalorder %s22, 0
    %p38 = por %p36, %p37
    %p39 = scmp.ne.s32.totalorder %s27, %s28
    %p40 = scmp.eq.s32.totalorder %s23, 1
    %p41 = por %p39, %p40
    %p43 = scmp.ne.s32.totalorder %s28, %s42
    %p44 = scmp.eq.s32.totalorder %s23, 0
    %p45 = por %p43, %p44
    %s47 = sadd.s32 %s46, 1
    %p50 = scmp.eq.s32.totalorder %s17, 1
    %p51 = scmp.ne.s32.totalorder %s46, %s48
    %p52 = scmp.eq.s32.totalorder %s17, 0
    %p53 = por %p51, %p52
    %p54 = scmp.ne.s32.totalorder %s46, %s48
    %p55 = scmp.eq.s32.totalorder %s22, 1
    %p56 = por %p54, %p55
    %p57 = scmp.ne.s32.totalorder %s48, %s49
    %p58 = scmp.eq.s32.totalorder %s22, 0
    %p59 = por %p57, %p58
    %p60 = scmp.ne.s32.totalorder %s48, %s49
    %p61 = scmp.eq.s32.totalorder %s23, 1
    %p62 = por %p60, %p61
    %p64 = scmp.ne.s32.totalorder %s49, %s63
    %p65 = scmp.eq.s32.totalorder %s23, 0
    %p66 = por %p64, %p65
    %s68 = sadd.s32 %s67, 1
    %p71 = scmp.eq.s32.totalorder %s17, 1
    %p72 = scmp.ne.s32.totalorder %s67, %s69
    %p73 = scmp.eq.s32.totalorder %s17, 0
    %p74 = por %p72, %p73
    %p75 = scmp.ne.s32.totalorder %s67, %s69
    %p76 = scmp.eq.s32.totalorder %s22, 1
    %p77 = por %p75, %p76
    %p78 = scmp.ne.s32.totalorder %s69, %s70
    %p79 = scmp.eq.s32.totalorder %s22, 0
    %p80 = por %p78, %p79
    %p81 = scmp.ne.s32.totalorder %s69, %s70
    %p82 = scmp.eq.s32.totalorder %s23, 1
    %p83 = por %p81, %p82
    %p85 = scmp.ne.s32.totalorder %s70, %s84
    %p86 = scmp.eq.s32.totalorder %s23, 0
    %p87 = por %p85, %p86
    %s89 = sadd.s32 %s88, 1
    %p92 = scmp.eq.s32.totalorder %s17, 1
    %p93 = scmp.ne.s32.totalorder %s88, %s90
    %p94 = scmp.eq.s32.totalorder %s17, 0
    %p95 = por %p93, %p94
    %p96 = scmp.ne.s32.totalorder %s88, %s90
    %p97 = scmp.eq.s32.totalorder %s22, 1
    %p98 = por %p96, %p97
    %p99 = scmp.ne.s32.totalorder %s90, %s91
    %p100 = scmp.eq.s32.totalorder %s22, 0
    %p101 = por %p99, %p100
    %p102 = scmp.ne.s32.totalorder %s90, %s91
    %p103 = scmp.eq.s32.totalorder %s23, 1
    %p104 = por %p102, %p103
    %p106 = scmp.ne.s32.totalorder %s91, %s105
    %p107 = scmp.eq.s32.totalorder %s23, 0
    %p108 = por %p106, %p107
    %s109 = ssub.s32 %s17, %s24
    %p110 = scmp.eq.s32.totalorder %s109, 0
    %s112 = sadd.s32 %s111, 1
    %s113 = scalar_select %p110, %s111, %s112
    %p116 = pneg %p110
    %p117 = scmp.eq.s32.totalorder %s17, 1
    %p118 = por %p116, %p117
    %p119 = scmp.ne.s32.totalorder %s111, %s114
    %p120 = scmp.eq.s32.totalorder %s17, 0
    %p121 = por %p119, %p120
    %p122 = scmp.ne.s32.totalorder %s111, %s114
    %p123 = scmp.eq.s32.totalorder %s22, 1
    %p124 = por %p122, %p123
    %p125 = scmp.ne.s32.totalorder %s114, %s115
    %p126 = scmp.eq.s32.totalorder %s22, 0
    %p127 = por %p125, %p126
    %p128 = scmp.ne.s32.totalorder %s114, %s115
    %p129 = scmp.eq.s32.totalorder %s23, 1
    %p130 = por %p128, %p129
    %p132 = scmp.ne.s32.totalorder %s115, %s131
    %p133 = scmp.eq.s32.totalorder %s23, 0
    %p134 = por %p132, %p133
    %p135 = scmp.le.s32.totalorder 1, %s17
    %p136 = scmp.lt.s32.totalorder %s17, 3
    %p137 = pnand %p135, %p136
    %p138 = pneg %p137
    // Predicated region
    $region9: #{_decode_cnn_jit.3} parent=5 // pred_check
      _
    $region10: #{_decode_cnn_jit.3} parent=5 // pred_check_branch
      %140 = sbr.rel (%p137) target = $region12
    $region11: #{_decode_cnn_jit.3} parent=5 // pred_region
      %s141 = ssub.s32 %s17, 1
      // Predicated region
      $region13: #{_decode_cnn_jit.3} parent=11 // pred_check
        %p142 = pneg %p38
      $region14: #{_decode_cnn_jit.3} parent=11 // pred_check_branch
        %144 = sbr.rel (%p142) target = $region16
      $region15: #{_decode_cnn_jit.3} parent=11 // pred_region
        _
      $region16: #{_decode_cnn_jit.3} parent=11 // pred_fallthru
        _
      // Predicated region
      $region17: #{_decode_cnn_jit.3} parent=11 // pred_check
        %p145 = pneg %p59
      $region18: #{_decode_cnn_jit.3} parent=11 // pred_check_branch
        %147 = sbr.rel (%p145) target = $region20
      $region19: #{_decode_cnn_jit.3} parent=11 // pred_region
        _
      $region20: #{_decode_cnn_jit.3} parent=11 // pred_fallthru
        _
      // Predicated region
      $region21: #{_decode_cnn_jit.3} parent=11 // pred_check
        %p148 = pneg %p80
      $region22: #{_decode_cnn_jit.3} parent=11 // pred_check_branch
        %150 = sbr.rel (%p148) target = $region24
      $region23: #{_decode_cnn_jit.3} parent=11 // pred_region
        _
      $region24: #{_decode_cnn_jit.3} parent=11 // pred_fallthru
        _
      // Predicated region
      $region25: #{_decode_cnn_jit.3} parent=11 // pred_check
        %p151 = pneg %p101
      $region26: #{_decode_cnn_jit.3} parent=11 // pred_check_branch
        %153 = sbr.rel (%p151) target = $region28
      $region27: #{_decode_cnn_jit.3} parent=11 // pred_region
        _
      $region28: #{_decode_cnn_jit.3} parent=11 // pred_fallthru
        _
    $region12: #{_decode_cnn_jit.3} parent=5 // pred_fallthru
      _
    %p154 = scmp.lt.s32.totalorder %s17, 2
    // Predicated region
    $region29: #{_decode_cnn_jit.3} parent=5 // pred_check
      %p155 = pneg %p154
    $region30: #{_decode_cnn_jit.3} parent=5 // pred_check_branch
      %157 = sbr.rel (%p155) target = $region32
    $region31: #{_decode_cnn_jit.3} parent=5 // pred_region
      _
    $region32: #{_decode_cnn_jit.3} parent=5 // pred_fallthru
      _
    %p158 = scmp.le.s32.totalorder 1, %s17
    %p159 = scmp.lt.s32.totalorder %s17, 3
    %p160 = pnand %p158, %p159
    %p161 = pneg %p160
    // Predicated region
    $region33: #{_decode_cnn_jit.3} parent=5 // pred_check
      _
    $region34: #{_decode_cnn_jit.3} parent=5 // pred_check_branch
      %163 = sbr.rel (%p160) target = $region36
    $region35: #{_decode_cnn_jit.3} parent=5 // pred_region
      %s164 = ssub.s32 %s17, 1
      %p165 = pneg %p38
      %p166 = pneg %p35
      %p167 = pneg %p59
      %p168 = pneg %p56
      %p169 = pneg %p80
      %p170 = pneg %p77
      %p171 = pneg %p101
      %p172 = pneg %p98
      %p173 = pneg %p127
      %p174 = pneg %p124
      %p175 = scmp.lt.s32.totalorder %s22, 1
      %s176 = scalar_select %p175, %s22, 1
      %s177 = smul.addr %s176, 8
      %s178 = scalar_lea.vmem %s5, %s177
      %p179 = scmp.lt.s32.totalorder %s22, 1
      %s180 = scalar_select %p179, %s22, 1
      %s181 = smul.addr %s180, 8
      %s182 = scalar_lea.vmem %s5, %s181
      %s183 = sld [smem:[#allocation3 + %s22]]
      %s184 = sadd.s32 %s22, 1
      %s185 = sld [smem:[#allocation3 + %s184]]
      %s186 = ssub.s32 %s185, %s183
      %s187 = scalar_lea.vmem %s1, %s183
      %v188 = vld [vmem:[%s187] sm:$0xff]
      %s189 = scalar_lea.vmem %s2, %s183
      %v190 = vld [vmem:[%s189] sm:$0xff]
      %191 = vxpose.xlu0.b32.start [1/16] %v188, 128
      %192 = vxpose.xlu0.b32.cont [2/16] 0.0, 128
      %193 = vxpose.xlu0.b32.cont [3/16] 0.0, 128
      %194 = vxpose.xlu0.b32.cont [4/16] 0.0, 128
      %195 = vxpose.xlu0.b32.cont [5/16] 0.0, 128
      %196 = vxpose.xlu0.b32.cont [6/16] 0.0, 128
      %197 = vxpose.xlu0.b32.cont [7/16] 0.0, 128
      %198 = vxpose.xlu0.b32.cont [8/16] 0.0, 128
      %199 = vxpose.xlu0.b32.cont [9/16] 0.0, 128
      %200 = vxpose.xlu0.b32.cont [10/16] 0.0, 128
      %201 = vxpose.xlu0.b32.cont [11/16] 0.0, 128
      %202 = vxpose.xlu0.b32.cont [12/16] 0.0, 128
      %203 = vxpose.xlu0.b32.cont [13/16] 0.0, 128
      %204 = vxpose.xlu0.b32.cont [14/16] 0.0, 128
      %205 = vxpose.xlu0.b32.cont [15/16] 0.0, 128
      %206 = vxpose.xlu0.b32.end [16/16] 0.0, 128
      %v207 = vpop.trf.xlu0
      %v208 = vpop.trf.xlu0
      %v209 = vpop.trf.xlu0
      %v210 = vpop.trf.xlu0
      %v211 = vpop.trf.xlu0
      %v212 = vpop.trf.xlu0
      %v213 = vpop.trf.xlu0
      %v214 = vpop.trf.xlu0
      %v215 = vpop.trf.xlu0
      %v216 = vpop.trf.xlu0
      %v217 = vpop.trf.xlu0
      %v218 = vpop.trf.xlu0
      %v219 = vpop.trf.xlu0
      %v220 = vpop.trf.xlu0
      %v221 = vpop.trf.xlu0
      %v222 = vpop.trf.xlu0
      %v223 = vlaneseq
      %v224 = vand.u32 %v223, 127
      %v225 = vstv %s186
      %vm226 = vcmp.lt.s32.totalorder %v224, %v225
      %v227 = vsel %vm226, 1, 0
      %vm228 = vcmp.eq.s32.totalorder %v227, 1
      %v229 = vsel %vm228, %v207, -1e+30
      %v230 = vsel %vm228, %v208, -1e+30
      %v231 = vsel %vm228, %v209, -1e+30
      %v232 = vsel %vm228, %v210, -1e+30
      %v233 = vsel %vm228, %v211, -1e+30
      %v234 = vsel %vm228, %v212, -1e+30
      %v235 = vsel %vm228, %v213, -1e+30
      %v236 = vsel %vm228, %v214, -1e+30
      %v237 = vsel %vm228, %v215, -1e+30
      %v238 = vsel %vm228, %v216, -1e+30
      %v239 = vsel %vm228, %v217, -1e+30
      %v240 = vsel %vm228, %v218, -1e+30
      %v241 = vsel %vm228, %v219, -1e+30
      %v242 = vsel %vm228, %v220, -1e+30
      %v243 = vsel %vm228, %v221, -1e+30
      %v244 = vsel %vm228, %v222, -1e+30
      %vm245 = vcmask 64512
      %v246 = vsel %vm245, %v229, -inf
      %247 = vmax.xlane.f32.xlu0 %v246
      %v248 = vpop.xlane.xlu0 %247
      %v249 = vsel %vm245, %v230, -inf
      %250 = vmax.xlane.f32.xlu0 %v249
      %v251 = vpop.xlane.xlu0 %250
      %v252 = vsel %vm245, %v231, -inf
      %253 = vmax.xlane.f32.xlu0 %v252
      %v254 = vpop.xlane.xlu0 %253
      %v255 = vsel %vm245, %v232, -inf
      %256 = vmax.xlane.f32.xlu0 %v255
      %v257 = vpop.xlane.xlu0 %256
      %v258 = vsel %vm245, %v233, -inf
      %259 = vmax.xlane.f32.xlu0 %v258
      %v260 = vpop.xlane.xlu0 %259
      %v261 = vsel %vm245, %v234, -inf
      %262 = vmax.xlane.f32.xlu0 %v261
      %v263 = vpop.xlane.xlu0 %262
      %v264 = vsel %vm245, %v235, -inf
      %265 = vmax.xlane.f32.xlu0 %v264
      %v266 = vpop.xlane.xlu0 %265
      %v267 = vsel %vm245, %v236, -inf
      %268 = vmax.xlane.f32.xlu0 %v267
      %v269 = vpop.xlane.xlu0 %268
      %v270 = vsel %vm245, %v237, -inf
      %271 = vmax.xlane.f32.xlu0 %v270
      %v272 = vpop.xlane.xlu0 %271
      %v273 = vsel %vm245, %v238, -inf
      %274 = vmax.xlane.f32.xlu0 %v273
      %v275 = vpop.xlane.xlu0 %274
      %v276 = vsel %vm245, %v239, -inf
      %277 = vmax.xlane.f32.xlu0 %v276
      %v278 = vpop.xlane.xlu0 %277
      %v279 = vsel %vm245, %v240, -inf
      %280 = vmax.xlane.f32.xlu0 %v279
      %v281 = vpop.xlane.xlu0 %280
      %v282 = vsel %vm245, %v241, -inf
      %283 = vmax.xlane.f32.xlu0 %v282
      %v284 = vpop.xlane.xlu0 %283
      %v285 = vsel %vm245, %v242, -inf
      %286 = vmax.xlane.f32.xlu0 %v285
      %v287 = vpop.xlane.xlu0 %286
      %v288 = vsel %vm245, %v243, -inf
      %289 = vmax.xlane.f32.xlu0 %v288
      %v290 = vpop.xlane.xlu0 %289
      %v291 = vsel %vm245, %v244, -inf
      %292 = vmax.xlane.f32.xlu0 %v291
      %v293 = vpop.xlane.xlu0 %292
      %v294 = vsub.f32 %v229, %v248
      %v295 = vsub.f32 %v230, %v251
      %v296 = vsub.f32 %v231, %v254
      %v297 = vsub.f32 %v232, %v257
      %v298 = vsub.f32 %v233, %v260
      %v299 = vsub.f32 %v234, %v263
      %v300 = vsub.f32 %v235, %v266
      %v301 = vsub.f32 %v236, %v269
      %v302 = vsub.f32 %v237, %v272
      %v303 = vsub.f32 %v238, %v275
      %v304 = vsub.f32 %v239, %v278
      %v305 = vsub.f32 %v240, %v281
      %v306 = vsub.f32 %v241, %v284
      %v307 = vsub.f32 %v242, %v287
      %v308 = vsub.f32 %v243, %v290
      %v309 = vsub.f32 %v244, %v293
      %v310 = vmul.f32 %v294, 1.442695
      %v311 = vpow.pop %v310
      %v312 = vmul.f32 %v295, 1.442695
      %v313 = vpow.pop %v312
      %v314 = vmul.f32 %v296, 1.442695
      %v315 = vpow.pop %v314
      %v316 = vmul.f32 %v297, 1.442695
      %v317 = vpow.pop %v316
      %v318 = vmul.f32 %v298, 1.442695
      %v319 = vpow.pop %v318
      %v320 = vmul.f32 %v299, 1.442695
      %v321 = vpow.pop %v320
      %v322 = vmul.f32 %v300, 1.442695
      %v323 = vpow.pop %v322
      %v324 = vmul.f32 %v301, 1.442695
      %v325 = vpow.pop %v324
      %v326 = vmul.f32 %v302, 1.442695
      %v327 = vpow.pop %v326
      %v328 = vmul.f32 %v303, 1.442695
      %v329 = vpow.pop %v328
      %v330 = vmul.f32 %v304, 1.442695
      %v331 = vpow.pop %v330
      %v332 = vmul.f32 %v305, 1.442695
      %v333 = vpow.pop %v332
      %v334 = vmul.f32 %v306, 1.442695
      %v335 = vpow.pop %v334
      %v336 = vmul.f32 %v307, 1.442695
      %v337 = vpow.pop %v336
      %v338 = vmul.f32 %v308, 1.442695
      %v339 = vpow.pop %v338
      %v340 = vmul.f32 %v309, 1.442695
      %v341 = vpow.pop %v340
      %v342 = vsel %vm228, %v311, 0.0
      %v343 = vsel %vm228, %v313, 0.0
      %v344 = vsel %vm228, %v315, 0.0
      %v345 = vsel %vm228, %v317, 0.0
      %v346 = vsel %vm228, %v319, 0.0
      %v347 = vsel %vm228, %v321, 0.0
      %v348 = vsel %vm228, %v323, 0.0
      %v349 = vsel %vm228, %v325, 0.0
      %v350 = vsel %vm228, %v327, 0.0
      %v351 = vsel %vm228, %v329, 0.0
      %v352 = vsel %vm228, %v331, 0.0
      %v353 = vsel %vm228, %v333, 0.0
      %v354 = vsel %vm228, %v335, 0.0
      %v355 = vsel %vm228, %v337, 0.0
      %v356 = vsel %vm228, %v339, 0.0
      %v357 = vsel %vm228, %v341, 0.0
      %v358 = vsel %vm245, %v342, 0.0
      %359 = vadd.xlane.f32.xlu0 %v358
      %v360 = vpop.xlane.xlu0 %359
      %v361 = vsel %vm245, %v343, 0.0
      %362 = vadd.xlane.f32.xlu0 %v361
      %v363 = vpop.xlane.xlu0 %362
      %v364 = vsel %vm245, %v344, 0.0
      %365 = vadd.xlane.f32.xlu0 %v364
      %v366 = vpop.xlane.xlu0 %365
      %v367 = vsel %vm245, %v345, 0.0
      %368 = vadd.xlane.f32.xlu0 %v367
      %v369 = vpop.xlane.xlu0 %368
      %v370 = vsel %vm245, %v346, 0.0
      %371 = vadd.xlane.f32.xlu0 %v370
      %v372 = vpop.xlane.xlu0 %371
      %v373 = vsel %vm245, %v347, 0.0
      %374 = vadd.xlane.f32.xlu0 %v373
      %v375 = vpop.xlane.xlu0 %374
      %v376 = vsel %vm245, %v348, 0.0
      %377 = vadd.xlane.f32.xlu0 %v376
      %v378 = vpop.xlane.xlu0 %377
      %v379 = vsel %vm245, %v349, 0.0
      %380 = vadd.xlane.f32.xlu0 %v379
      %v381 = vpop.xlane.xlu0 %380
      %v382 = vsel %vm245, %v350, 0.0
      %383 = vadd.xlane.f32.xlu0 %v382
      %v384 = vpop.xlane.xlu0 %383
      %v385 = vsel %vm245, %v351, 0.0
      %386 = vadd.xlane.f32.xlu0 %v385
      %v387 = vpop.xlane.xlu0 %386
      %v388 = vsel %vm245, %v352, 0.0
      %389 = vadd.xlane.f32.xlu0 %v388
      %v390 = vpop.xlane.xlu0 %389
      %v391 = vsel %vm245, %v353, 0.0
      %392 = vadd.xlane.f32.xlu0 %v391
      %v393 = vpop.xlane.xlu0 %392
      %v394 = vsel %vm245, %v354, 0.0
      %395 = vadd.xlane.f32.xlu0 %v394
      %v396 = vpop.xlane.xlu0 %395
      %v397 = vsel %vm245, %v355, 0.0
      %398 = vadd.xlane.f32.xlu0 %v397
      %v399 = vpop.xlane.xlu0 %398
      %v400 = vsel %vm245, %v356, 0.0
      %401 = vadd.xlane.f32.xlu0 %v400
      %v402 = vpop.xlane.xlu0 %401
      %v403 = vsel %vm245, %v357, 0.0
      %404 = vadd.xlane.f32.xlu0 %v403
      %v405 = vpop.xlane.xlu0 %404
      %v406 = vmax.f32 %v360, 1e-30
      %v407 = vmax.f32 %v363, 1e-30
      %v408 = vmax.f32 %v366, 1e-30
      %v409 = vmax.f32 %v369, 1e-30
      %v410 = vmax.f32 %v372, 1e-30
      %v411 = vmax.f32 %v375, 1e-30
      %v412 = vmax.f32 %v378, 1e-30
      %v413 = vmax.f32 %v381, 1e-30
      %v414 = vmax.f32 %v384, 1e-30
      %v415 = vmax.f32 %v387, 1e-30
      %v416 = vmax.f32 %v390, 1e-30
      %v417 = vmax.f32 %v393, 1e-30
      %v418 = vmax.f32 %v396, 1e-30
      %v419 = vmax.f32 %v399, 1e-30
      %v420 = vmax.f32 %v402, 1e-30
      %v421 = vmax.f32 %v405, 1e-30
      %v422 = vrcp.pop %v406
      %v423 = vrcp.pop %v407
      %v424 = vrcp.pop %v408
      %v425 = vrcp.pop %v409
      %v426 = vrcp.pop %v410
      %v427 = vrcp.pop %v411
      %v428 = vrcp.pop %v412
      %v429 = vrcp.pop %v413
      %v430 = vrcp.pop %v414
      %v431 = vrcp.pop %v415
      %v432 = vrcp.pop %v416
      %v433 = vrcp.pop %v417
      %v434 = vrcp.pop %v418
      %v435 = vrcp.pop %v419
      %v436 = vrcp.pop %v420
      %v437 = vrcp.pop %v421
      %v438 = vmul.f32 %v342, %v422
      %v439 = vmul.f32 %v343, %v423
      %v440 = vmul.f32 %v344, %v424
      %v441 = vmul.f32 %v345, %v425
      %v442 = vmul.f32 %v346, %v426
      %v443 = vmul.f32 %v347, %v427
      %v444 = vmul.f32 %v348, %v428
      %v445 = vmul.f32 %v349, %v429
      %v446 = vmul.f32 %v350, %v430
      %v447 = vmul.f32 %v351, %v431
      %v448 = vmul.f32 %v352, %v432
      %v449 = vmul.f32 %v353, %v433
      %v450 = vmul.f32 %v354, %v434
      %v451 = vmul.f32 %v355, %v435
      %v452 = vmul.f32 %v356, %v436
      %v453 = vmul.f32 %v357, %v437
      %v455 = vsel %vm245, %v438, 0
      %v458 = vsel %vm245, %v439, 0
      %v461 = vsel %vm245, %v440, 0
      %v464 = vsel %vm245, %v441, 0
      %v467 = vsel %vm245, %v442, 0
      %v470 = vsel %vm245, %v443, 0
      %v473 = vsel %vm245, %v444, 0
      %v476 = vsel %vm245, %v445, 0
      %v479 = vsel %vm245, %v446, 0
      %v482 = vsel %vm245, %v447, 0
      %v485 = vsel %vm245, %v448, 0
      %v488 = vsel %vm245, %v449, 0
      %v491 = vsel %vm245, %v450, 0
      %v494 = vsel %vm245, %v451, 0
      %v497 = vsel %vm245, %v452, 0
      %v500 = vsel %vm245, %v453, 0
      %502 = vmatprep.subr.mxu0 0.0
      %503 = vmatpush1.msra.mxu0 %v190
      %504 = vmatprep.subr.mxu0 0.0
      %505 = vmatpush1.msra.mxu0 0.0
      %506 = vmatprep.subr.mxu0 0.0
      %507 = vmatpush1.msra.mxu0 0.0
      %508 = vmatprep.subr.mxu0 0.0
      %509 = vmatpush1.msra.mxu0 0.0
      %510 = vmatprep.subr.mxu0 0.0
      %511 = vmatpush1.msra.mxu0 0.0
      %512 = vmatprep.subr.mxu0 0.0
      %513 = vmatpush1.msra.mxu0 0.0
      %514 = vmatprep.subr.mxu0 0.0
      %515 = vmatpush1.msra.mxu0 0.0
      %516 = vmatprep.subr.mxu0 0.0
      %517 = vmatpush1.msra.mxu0 0.0
      %518 = vmatprep.subr.mxu0 0.0
      %519 = vmatpush1.msra.mxu0 0.0
      %520 = vmatprep.subr.mxu0 0.0
      %521 = vmatpush1.msra.mxu0 0.0
      %522 = vmatprep.subr.mxu0 0.0
      %523 = vmatpush1.msra.mxu0 0.0
      %524 = vmatprep.subr.mxu0 0.0
      %525 = vmatpush1.msra.mxu0 0.0
      %526 = vmatprep.subr.mxu0 0.0
      %527 = vmatpush1.msra.mxu0 0.0
      %528 = vmatprep.subr.mxu0 0.0
      %529 = vmatpush1.msra.mxu0 0.0
      %530 = vmatprep.subr.mxu0 0.0
      %531 = vmatpush1.msra.mxu0 0.0
      %532 = vmatprep.subr.mxu0 0.0
      %533 = vmatpush1.msra.mxu0 0.0
      %534 = vmatprep.subr.mxu0 0.0
      %535 = vmatpush1.msra.mxu0 0.0
      %536 = vmatprep.subr.mxu0 0.0
      %537 = vmatpush1.msra.mxu0 0.0
      %538 = vmatprep.subr.mxu0 0.0
      %539 = vmatpush1.msra.mxu0 0.0
      %540 = vmatprep.subr.mxu0 0.0
      %541 = vmatpush1.msra.mxu0 0.0
      %542 = vmatprep.subr.mxu0 0.0
      %543 = vmatpush1.msra.mxu0 0.0
      %544 = vmatprep.subr.mxu0 0.0
      %545 = vmatpush1.msra.mxu0 0.0
      %546 = vmatprep.subr.mxu0 0.0
      %547 = vmatpush1.msra.mxu0 0.0
      %548 = vmatprep.subr.mxu0 0.0
      %549 = vmatpush1.msra.mxu0 0.0
      %550 = vmatprep.subr.mxu0 0.0
      %551 = vmatpush1.msra.mxu0 0.0
      %552 = vmatprep.subr.mxu0 0.0
      %553 = vmatpush1.msra.mxu0 0.0
      %554 = vmatprep.subr.mxu0 0.0
      %555 = vmatpush1.msra.mxu0 0.0
      %556 = vmatprep.subr.mxu0 0.0
      %557 = vmatpush1.msra.mxu0 0.0
      %558 = vmatprep.subr.mxu0 0.0
      %559 = vmatpush1.msra.mxu0 0.0
      %560 = vmatprep.subr.mxu0 0.0
      %561 = vmatpush1.msra.mxu0 0.0
      %562 = vmatprep.subr.mxu0 0.0
      %563 = vmatpush1.msra.mxu0 0.0
      %564 = vmatprep.subr.mxu0 0.0
      %565 = vmatpush1.msra.mxu0 0.0
      %566 = vmatprep.mubr.f32.mxu0 0.0
      %567 = vmatmul.mubr.f32.gmra.mrb[0].mxu0 %v455
      %v568 = vpop.f32.mrb[0].mxu0
      %v569 = vadd.f32 0.0, %v568
      %v570 = vpop.f32.mrb[0].mxu0
      %571 = vmatprep.mubr.f32.mxu0 0.0
      %572 = vmatmul.mubr.f32.gmra.mrb[0].mxu0 %v458
      %v573 = vpop.f32.mrb[0].mxu0
      %v574 = vadd.f32 0.0, %v573
      %v575 = vpop.f32.mrb[0].mxu0
      %576 = vmatprep.mubr.f32.mxu0 0.0
      %577 = vmatmul.mubr.f32.gmra.mrb[0].mxu0 %v461
      %v578 = vpop.f32.mrb[0].mxu0
      %v579 = vadd.f32 0.0, %v578
      %v580 = vpop.f32.mrb[0].mxu0
      %581 = vmatprep.mubr.f32.mxu0 0.0
      %582 = vmatmul.mubr.f32.gmra.mrb[0].mxu0 %v464
      %v583 = vpop.f32.mrb[0].mxu0
      %v584 = vadd.f32 0.0, %v583
      %v585 = vpop.f32.mrb[0].mxu0
      %586 = vmatprep.mubr.f32.mxu0 0.0
      %587 = vmatmul.mubr.f32.gmra.mrb[0].mxu0 %v467
      %v588 = vpop.f32.mrb[0].mxu0
      %v589 = vadd.f32 0.0, %v588
      %v590 = vpop.f32.mrb[0].mxu0
      %591 = vmatprep.mubr.f32.mxu0 0.0
      %592 = vmatmul.mubr.f32.gmra.mrb[0].mxu0 %v470
      %v593 = vpop.f32.mrb[0].mxu0
      %v594 = vadd.f32 0.0, %v593
      %v595 = vpop.f32.mrb[0].mxu0
      %596 = vmatprep.mubr.f32.mxu0 0.0
      %597 = vmatmul.mubr.f32.gmra.mrb[0].mxu0 %v473
      %v598 = vpop.f32.mrb[0].mxu0
      %v599 = vadd.f32 0.0, %v598
      %v600 = vpop.f32.mrb[0].mxu0
      %601 = vmatprep.mubr.f32.mxu0 0.0
      %602 = vmatmul.mubr.f32.gmra.mrb[0].mxu0 %v476
      %v603 = vpop.f32.mrb[0].mxu0
      %v604 = vadd.f32 0.0, %v603
      %v605 = vpop.f32.mrb[0].mxu0
      %606 = vmatprep.mubr.f32.mxu0 0.0
      %607 = vmatmul.mubr.f32.gmra.mrb[0].mxu0 %v479
      %v608 = vpop.f32.mrb[0].mxu0
      %v609 = vadd.f32 0.0, %v608
      %v610 = vpop.f32.mrb[0].mxu0
      %611 = vmatprep.mubr.f32.mxu0 0.0
      %612 = vmatmul.mubr.f32.gmra.mrb[0].mxu0 %v482
      %v613 = vpop.f32.mrb[0].mxu0
      %v614 = vadd.f32 0.0, %v613
      %v615 = vpop.f32.mrb[0].mxu0
      %616 = vmatprep.mubr.f32.mxu0 0.0
      %617 = vmatmul.mubr.f32.gmra.mrb[0].mxu0 %v485
      %v618 = vpop.f32.mrb[0].mxu0
      %v619 = vadd.f32 0.0, %v618
      %v620 = vpop.f32.mrb[0].mxu0
      %621 = vmatprep.mubr.f32.mxu0 0.0
      %622 = vmatmul.mubr.f32.gmra.mrb[0].mxu0 %v488
      %v623 = vpop.f32.mrb[0].mxu0
      %v624 = vadd.f32 0.0, %v623
      %v625 = vpop.f32.mrb[0].mxu0
      %626 = vmatprep.mubr.f32.mxu0 0.0
      %627 = vmatmul.mubr.f32.gmra.mrb[0].mxu0 %v491
      %v628 = vpop.f32.mrb[0].mxu0
      %v629 = vadd.f32 0.0, %v628
      %v630 = vpop.f32.mrb[0].mxu0
      %631 = vmatprep.mubr.f32.mxu0 0.0
      %632 = vmatmul.mubr.f32.gmra.mrb[0].mxu0 %v494
      %v633 = vpop.f32.mrb[0].mxu0
      %v634 = vadd.f32 0.0, %v633
      %v635 = vpop.f32.mrb[0].mxu0
      %636 = vmatprep.mubr.f32.mxu0 0.0
      %637 = vmatmul.mubr.f32.gmra.mrb[0].mxu0 %v497
      %v638 = vpop.f32.mrb[0].mxu0
      %v639 = vadd.f32 0.0, %v638
      %v640 = vpop.f32.mrb[0].mxu0
      %641 = vmatprep.mubr.f32.mxu0 0.0
      %642 = vmatmul.mubr.f32.gmra.mrb[0].mxu0 %v500
      %v643 = vpop.f32.mrb[0].mxu0
      %v644 = vadd.f32 0.0, %v643
      %v645 = vpop.f32.mrb[0].mxu0
      %646 = vdwg.mxu0
      %v647 = vld [vmem:[%s3] sm:$0xff]
      %v648 = vld [vmem:[%s3 + $0x8] sm:$0xff]
      %v649 = vld [vmem:[%s3 + $0x10] sm:$0xff]
      %v650 = vld [vmem:[%s3 + $0x18] sm:$0xff]
      %v651 = vld [vmem:[%s3 + $0x20] sm:$0xff]
      %v652 = vld [vmem:[%s3 + $0x28] sm:$0xff]
      %v653 = vld [vmem:[%s3 + $0x30] sm:$0xff]
      %v654 = vld [vmem:[%s3 + $0x38] sm:$0xff]
      %v655 = vld [vmem:[%s3 + $0x40] sm:$0xff]
      %v656 = vld [vmem:[%s3 + $0x48] sm:$0xff]
      %v657 = vld [vmem:[%s3 + $0x50] sm:$0xff]
      %v658 = vld [vmem:[%s3 + $0x58] sm:$0xff]
      %v659 = vld [vmem:[%s3 + $0x60] sm:$0xff]
      %v660 = vld [vmem:[%s3 + $0x68] sm:$0xff]
      %v661 = vld [vmem:[%s3 + $0x70] sm:$0xff]
      %v662 = vld [vmem:[%s3 + $0x78] sm:$0xff]
      %v663 = vld [vmem:[%s4] sm:$0x1]
      %v665 = vlaneseq
      %v666 = vshrl.u32 %v665, 7
      %v667 = vsub.s32 0, %v666
      %v668 = vrot.slane %v663, %v667
      %670 = vmatprep.subr.mxu0 0.0
      %671 = vmatpush1.msra.mxu0 %v647
      %672 = vmatprep.subr.mxu0 0.0
      %673 = vmatpush1.msra.mxu0 %v648
      %674 = vmatprep.subr.mxu0 0.0
      %675 = vmatpush1.msra.mxu0 %v649
      %676 = vmatprep.subr.mxu0 0.0
      %677 = vmatpush1.msra.mxu0 %v650
      %678 = vmatprep.subr.mxu0 0.0
      %679 = vmatpush1.msra.mxu0 %v651
      %680 = vmatprep.subr.mxu0 0.0
      %681 = vmatpush1.msra.mxu0 %v652
      %682 = vmatprep.subr.mxu0 0.0
      %683 = vmatpush1.msra.mxu0 %v653
      %684 = vmatprep.subr.mxu0 0.0
      %685 = vmatpush1.msra.mxu0 %v654
      %686 = vmatprep.subr.mxu0 0.0
      %687 = vmatpush1.msra.mxu0 %v655
      %688 = vmatprep.subr.mxu0 0.0
      %689 = vmatpush1.msra.mxu0 %v656
      %690 = vmatprep.subr.mxu0 0.0
      %691 = vmatpush1.msra.mxu0 %v657
      %692 = vmatprep.subr.mxu0 0.0
      %693 = vmatpush1.msra.mxu0 %v658
      %694 = vmatprep.subr.mxu0 0.0
      %695 = vmatpush1.msra.mxu0 %v659
      %696 = vmatprep.subr.mxu0 0.0
      %697 = vmatpush1.msra.mxu0 %v660
      %698 = vmatprep.subr.mxu0 0.0
      %699 = vmatpush1.msra.mxu0 %v661
      %700 = vmatprep.subr.mxu0 0.0
      %701 = vmatpush1.msra.mxu0 %v662
      %702 = vmatprep.subr.mxu0 0.0
      %703 = vmatpush1.msra.mxu0 0.0
      %704 = vmatprep.subr.mxu0 0.0
      %705 = vmatpush1.msra.mxu0 0.0
      %706 = vmatprep.subr.mxu0 0.0
      %707 = vmatpush1.msra.mxu0 0.0
      %708 = vmatprep.subr.mxu0 0.0
      %709 = vmatpush1.msra.mxu0 0.0
      %710 = vmatprep.subr.mxu0 0.0
      %711 = vmatpush1.msra.mxu0 0.0
      %712 = vmatprep.subr.mxu0 0.0
      %713 = vmatpush1.msra.mxu0 0.0
      %714 = vmatprep.subr.mxu0 0.0
      %715 = vmatpush1.msra.mxu0 0.0
      %716 = vmatprep.subr.mxu0 0.0
      %717 = vmatpush1.msra.mxu0 0.0
      %718 = vmatprep.subr.mxu0 0.0
      %719 = vmatpush1.msra.mxu0 0.0
      %720 = vmatprep.subr.mxu0 0.0
      %721 = vmatpush1.msra.mxu0 0.0
      %722 = vmatprep.subr.mxu0 0.0
      %723 = vmatpush1.msra.mxu0 0.0
      %724 = vmatprep.subr.mxu0 0.0
      %725 = vmatpush1.msra.mxu0 0.0
      %726 = vmatprep.subr.mxu0 0.0
      %727 = vmatpush1.msra.mxu0 0.0
      %728 = vmatprep.subr.mxu0 0.0
      %729 = vmatpush1.msra.mxu0 0.0
      %730 = vmatprep.subr.mxu0 0.0
      %731 = vmatpush1.msra.mxu0 0.0
      %732 = vmatprep.subr.mxu0 0.0
      %733 = vmatpush1.msra.mxu0 0.0
      %734 = vmatprep.mubr.f32.mxu0 0.0
      %735 = vmatmul.mubr.f32.gmra.mrb[0].mxu0 %v569
      %v736 = vpop.f32.mrb[0].mxu0
      %v737 = vadd.f32 %v668, %v736
      %v738 = vpop.f32.mrb[0].mxu0
      %739 = vmatprep.mubr.f32.mxu0 0.0
      %740 = vmatmul.mubr.f32.gmra.mrb[0].mxu0 %v574
      %v741 = vpop.f32.mrb[0].mxu0
      %v742 = vadd.f32 %v668, %v741
      %v743 = vpop.f32.mrb[0].mxu0
      %744 = vmatprep.mubr.f32.mxu0 0.0
      %745 = vmatmul.mubr.f32.gmra.mrb[0].mxu0 %v579
      %v746 = vpop.f32.mrb[0].mxu0
      %v747 = vadd.f32 %v668, %v746
      %v748 = vpop.f32.mrb[0].mxu0
      %749 = vmatprep.mubr.f32.mxu0 0.0
      %750 = vmatmul.mubr.f32.gmra.mrb[0].mxu0 %v584
      %v751 = vpop.f32.mrb[0].mxu0
      %v752 = vadd.f32 %v668, %v751
      %v753 = vpop.f32.mrb[0].mxu0
      %754 = vmatprep.mubr.f32.mxu0 0.0
      %755 = vmatmul.mubr.f32.gmra.mrb[0].mxu0 %v589
      %v756 = vpop.f32.mrb[0].mxu0
      %v757 = vadd.f32 %v668, %v756
      %v758 = vpop.f32.mrb[0].mxu0
      %759 = vmatprep.mubr.f32.mxu0 0.0
      %760 = vmatmul.mubr.f32.gmra.mrb[0].mxu0 %v594
      %v761 = vpop.f32.mrb[0].mxu0
      %v762 = vadd.f32 %v668, %v761
      %v763 = vpop.f32.mrb[0].mxu0
      %764 = vmatprep.mubr.f32.mxu0 0.0
      %765 = vmatmul.mubr.f32.gmra.mrb[0].mxu0 %v599
      %v766 = vpop.f32.mrb[0].mxu0
      %v767 = vadd.f32 %v668, %v766
      %v768 = vpop.f32.mrb[0].mxu0
      %769 = vmatprep.mubr.f32.mxu0 0.0
      %770 = vmatmul.mubr.f32.gmra.mrb[0].mxu0 %v604
      %v771 = vpop.f32.mrb[0].mxu0
      %v772 = vadd.f32 %v668, %v771
      %v773 = vpop.f32.mrb[0].mxu0
      %774 = vmatprep.mubr.f32.mxu0 0.0
      %775 = vmatmul.mubr.f32.gmra.mrb[0].mxu0 %v609
      %v776 = vpop.f32.mrb[0].mxu0
      %v777 = vadd.f32 %v668, %v776
      %v778 = vpop.f32.mrb[0].mxu0
      %779 = vmatprep.mubr.f32.mxu0 0.0
      %780 = vmatmul.mubr.f32.gmra.mrb[0].mxu0 %v614
      %v781 = vpop.f32.mrb[0].mxu0
      %v782 = vadd.f32 %v668, %v781
      %v783 = vpop.f32.mrb[0].mxu0
      %784 = vmatprep.mubr.f32.mxu0 0.0
      %785 = vmatmul.mubr.f32.gmra.mrb[0].mxu0 %v619
      %v786 = vpop.f32.mrb[0].mxu0
      %v787 = vadd.f32 %v668, %v786
      %v788 = vpop.f32.mrb[0].mxu0
      %789 = vmatprep.mubr.f32.mxu0 0.0
      %790 = vmatmul.mubr.f32.gmra.mrb[0].mxu0 %v624
      %v791 = vpop.f32.mrb[0].mxu0
      %v792 = vadd.f32 %v668, %v791
      %v793 = vpop.f32.mrb[0].mxu0
      %794 = vmatprep.mubr.f32.mxu0 0.0
      %795 = vmatmul.mubr.f32.gmra.mrb[0].mxu0 %v629
      %v796 = vpop.f32.mrb[0].mxu0
      %v797 = vadd.f32 %v668, %v796
      %v798 = vpop.f32.mrb[0].mxu0
      %799 = vmatprep.mubr.f32.mxu0 0.0
      %800 = vmatmul.mubr.f32.gmra.mrb[0].mxu0 %v634
      %v801 = vpop.f32.mrb[0].mxu0
      %v802 = vadd.f32 %v668, %v801
      %v803 = vpop.f32.mrb[0].mxu0
      %804 = vmatprep.mubr.f32.mxu0 0.0
      %805 = vmatmul.mubr.f32.gmra.mrb[0].mxu0 %v639
      %v806 = vpop.f32.mrb[0].mxu0
      %v807 = vadd.f32 %v668, %v806
      %v808 = vpop.f32.mrb[0].mxu0
      %809 = vmatprep.mubr.f32.mxu0 0.0
      %810 = vmatmul.mubr.f32.gmra.mrb[0].mxu0 %v644
      %v811 = vpop.f32.mrb[0].mxu0
      %v812 = vadd.f32 %v668, %v811
      %v813 = vpop.f32.mrb[0].mxu0
      %814 = vdwg.mxu0
      %815 = vmax.xlane.f32.xlu0 %v737
      %v816 = vpop.xlane.xlu0 %815
      %817 = vmax.xlane.f32.xlu0 %v742
      %v818 = vpop.xlane.xlu0 %817
      %819 = vmax.xlane.f32.xlu0 %v747
      %v820 = vpop.xlane.xlu0 %819
      %821 = vmax.xlane.f32.xlu0 %v752
      %v822 = vpop.xlane.xlu0 %821
      %823 = vmax.xlane.f32.xlu0 %v757
      %v824 = vpop.xlane.xlu0 %823
      %825 = vmax.xlane.f32.xlu0 %v762
      %v826 = vpop.xlane.xlu0 %825
      %827 = vmax.xlane.f32.xlu0 %v767
      %v828 = vpop.xlane.xlu0 %827
      %829 = vmax.xlane.f32.xlu0 %v772
      %v830 = vpop.xlane.xlu0 %829
      %831 = vmax.xlane.f32.xlu0 %v777
      %v832 = vpop.xlane.xlu0 %831
      %833 = vmax.xlane.f32.xlu0 %v782
      %v834 = vpop.xlane.xlu0 %833
      %835 = vmax.xlane.f32.xlu0 %v787
      %v836 = vpop.xlane.xlu0 %835
      %837 = vmax.xlane.f32.xlu0 %v792
      %v838 = vpop.xlane.xlu0 %837
      %839 = vmax.xlane.f32.xlu0 %v797
      %v840 = vpop.xlane.xlu0 %839
      %841 = vmax.xlane.f32.xlu0 %v802
      %v842 = vpop.xlane.xlu0 %841
      %843 = vmax.xlane.f32.xlu0 %v807
      %v844 = vpop.xlane.xlu0 %843
      %845 = vmax.xlane.f32.xlu0 %v812
      %v846 = vpop.xlane.xlu0 %845
      %v847 = vsub.f32 %v737, %v816
      %v848 = vsub.f32 %v742, %v818
      %v849 = vsub.f32 %v747, %v820
      %v850 = vsub.f32 %v752, %v822
      %v851 = vsub.f32 %v757, %v824
      %v852 = vsub.f32 %v762, %v826
      %v853 = vsub.f32 %v767, %v828
      %v854 = vsub.f32 %v772, %v830
      %v855 = vsub.f32 %v777, %v832
      %v856 = vsub.f32 %v782, %v834
      %v857 = vsub.f32 %v787, %v836
      %v858 = vsub.f32 %v792, %v838
      %v859 = vsub.f32 %v797, %v840
      %v860 = vsub.f32 %v802, %v842
      %v861 = vsub.f32 %v807, %v844
      %v862 = vsub.f32 %v812, %v846
      %v863 = vmul.f32 %v847, 1.442695
      %v864 = vpow.pop %v863
      %v865 = vmul.f32 %v848, 1.442695
      %v866 = vpow.pop %v865
      %v867 = vmul.f32 %v849, 1.442695
      %v868 = vpow.pop %v867
      %v869 = vmul.f32 %v850, 1.442695
      %v870 = vpow.pop %v869
      %v871 = vmul.f32 %v851, 1.442695
      %v872 = vpow.pop %v871
      %v873 = vmul.f32 %v852, 1.442695
      %v874 = vpow.pop %v873
      %v875 = vmul.f32 %v853, 1.442695
      %v876 = vpow.pop %v875
      %v877 = vmul.f32 %v854, 1.442695
      %v878 = vpow.pop %v877
      %v879 = vmul.f32 %v855, 1.442695
      %v880 = vpow.pop %v879
      %v881 = vmul.f32 %v856, 1.442695
      %v882 = vpow.pop %v881
      %v883 = vmul.f32 %v857, 1.442695
      %v884 = vpow.pop %v883
      %v885 = vmul.f32 %v858, 1.442695
      %v886 = vpow.pop %v885
      %v887 = vmul.f32 %v859, 1.442695
      %v888 = vpow.pop %v887
      %v889 = vmul.f32 %v860, 1.442695
      %v890 = vpow.pop %v889
      %v891 = vmul.f32 %v861, 1.442695
      %v892 = vpow.pop %v891
      %v893 = vmul.f32 %v862, 1.442695
      %v894 = vpow.pop %v893
      %895 = vadd.xlane.f32.xlu0 %v864
      %v896 = vpop.xlane.xlu0 %895
      %897 = vadd.xlane.f32.xlu0 %v866
      %v898 = vpop.xlane.xlu0 %897
      %899 = vadd.xlane.f32.xlu0 %v868
      %v900 = vpop.xlane.xlu0 %899
      %901 = vadd.xlane.f32.xlu0 %v870
      %v902 = vpop.xlane.xlu0 %901
      %903 = vadd.xlane.f32.xlu0 %v872
      %v904 = vpop.xlane.xlu0 %903
      %905 = vadd.xlane.f32.xlu0 %v874
      %v906 = vpop.xlane.xlu0 %905
      %907 = vadd.xlane.f32.xlu0 %v876
      %v908 = vpop.xlane.xlu0 %907
      %909 = vadd.xlane.f32.xlu0 %v878
      %v910 = vpop.xlane.xlu0 %909
      %911 = vadd.xlane.f32.xlu0 %v880
      %v912 = vpop.xlane.xlu0 %911
      %913 = vadd.xlane.f32.xlu0 %v882
      %v914 = vpop.xlane.xlu0 %913
      %915 = vadd.xlane.f32.xlu0 %v884
      %v916 = vpop.xlane.xlu0 %915
      %917 = vadd.xlane.f32.xlu0 %v886
      %v918 = vpop.xlane.xlu0 %917
      %919 = vadd.xlane.f32.xlu0 %v888
      %v920 = vpop.xlane.xlu0 %919
      %921 = vadd.xlane.f32.xlu0 %v890
      %v922 = vpop.xlane.xlu0 %921
      %923 = vadd.xlane.f32.xlu0 %v892
      %v924 = vpop.xlane.xlu0 %923
      %925 = vadd.xlane.f32.xlu0 %v894
      %v926 = vpop.xlane.xlu0 %925
      %v927 = vrcp.pop %v896
      %v928 = vmul.f32 %v864, %v927
      %v929 = vrcp.pop %v898
      %v930 = vmul.f32 %v866, %v929
      %v931 = vrcp.pop %v900
      %v932 = vmul.f32 %v868, %v931
      %v933 = vrcp.pop %v902
      %v934 = vmul.f32 %v870, %v933
      %v935 = vrcp.pop %v904
      %v936 = vmul.f32 %v872, %v935
      %v937 = vrcp.pop %v906
      %v938 = vmul.f32 %v874, %v937
      %v939 = vrcp.pop %v908
      %v940 = vmul.f32 %v876, %v939
      %v941 = vrcp.pop %v910
      %v942 = vmul.f32 %v878, %v941
      %v943 = vrcp.pop %v912
      %v944 = vmul.f32 %v880, %v943
      %v945 = vrcp.pop %v914
      %v946 = vmul.f32 %v882, %v945
      %v947 = vrcp.pop %v916
      %v948 = vmul.f32 %v884, %v947
      %v949 = vrcp.pop %v918
      %v950 = vmul.f32 %v886, %v949
      %v951 = vrcp.pop %v920
      %v952 = vmul.f32 %v888, %v951
      %v953 = vrcp.pop %v922
      %v954 = vmul.f32 %v890, %v953
      %v955 = vrcp.pop %v924
      %v956 = vmul.f32 %v892, %v955
      %v957 = vrcp.pop %v926
      %v958 = vmul.f32 %v894, %v957
      %v959 = vlaneseq
      %v960 = vshrl.u32 %v959, 7
      %v961 = vadd.s32 %v960, 8
      %v962 = vadd.s32 %v960, 16
      %v963 = vadd.s32 %v960, 24
      %v964 = vadd.s32 %v960, 32
      %v965 = vadd.s32 %v960, 40
      %v966 = vadd.s32 %v960, 48
      %v967 = vadd.s32 %v960, 56
      %v968 = vadd.s32 %v960, 64
      %v969 = vadd.s32 %v960, 72
      %v970 = vadd.s32 %v960, 80
      %v971 = vadd.s32 %v960, 88
      %v972 = vadd.s32 %v960, 96
      %v973 = vadd.s32 %v960, 104
      %v974 = vadd.s32 %v960, 112
      %v975 = vadd.s32 %v960, 120
      %vm976 = vcmp.eq.s32.totalorder %v960, %v224
      %vm977 = vcmp.eq.s32.totalorder %v961, %v224
      %vm978 = vcmp.eq.s32.totalorder %v962, %v224
      %vm979 = vcmp.eq.s32.totalorder %v963, %v224
      %vm980 = vcmp.eq.s32.totalorder %v964, %v224
      %vm981 = vcmp.eq.s32.totalorder %v965, %v224
      %vm982 = vcmp.eq.s32.totalorder %v966, %v224
      %vm983 = vcmp.eq.s32.totalorder %v967, %v224
      %vm984 = vcmp.eq.s32.totalorder %v968, %v224
      %vm985 = vcmp.eq.s32.totalorder %v969, %v224
      %vm986 = vcmp.eq.s32.totalorder %v970, %v224
      %vm987 = vcmp.eq.s32.totalorder %v971, %v224
      %vm988 = vcmp.eq.s32.totalorder %v972, %v224
      %vm989 = vcmp.eq.s32.totalorder %v973, %v224
      %vm990 = vcmp.eq.s32.totalorder %v974, %v224
      %vm991 = vcmp.eq.s32.totalorder %v975, %v224
      %v992 = vsel %vm976, %v928, 0.0
      %v993 = vsel %vm977, %v930, 0.0
      %v994 = vsel %vm978, %v932, 0.0
      %v995 = vsel %vm979, %v934, 0.0
      %v996 = vsel %vm980, %v936, 0.0
      %v997 = vsel %vm981, %v938, 0.0
      %v998 = vsel %vm982, %v940, 0.0
      %v999 = vsel %vm983, %v942, 0.0
      %v1000 = vsel %vm984, %v944, 0.0
      %v1001 = vsel %vm985, %v946, 0.0
      %v1002 = vsel %vm986, %v948, 0.0
      %v1003 = vsel %vm987, %v950, 0.0
      %v1004 = vsel %vm988, %v952, 0.0
      %v1005 = vsel %vm989, %v954, 0.0
      %v1006 = vsel %vm990, %v956, 0.0
      %v1007 = vsel %vm991, %v958, 0.0
      %v1008 = vadd.f32 %v992, %v993
      %v1009 = vadd.f32 %v1008, %v994
      %v1010 = vadd.f32 %v1009, %v995
      %v1011 = vadd.f32 %v1010, %v996
      %v1012 = vadd.f32 %v1011, %v997
      %v1013 = vadd.f32 %v1012, %v998
      %v1014 = vadd.f32 %v1013, %v999
      %v1015 = vadd.f32 %v1014, %v1000
      %v1016 = vadd.f32 %v1015, %v1001
      %v1017 = vadd.f32 %v1016, %v1002
      %v1018 = vadd.f32 %v1017, %v1003
      %v1019 = vadd.f32 %v1018, %v1004
      %v1020 = vadd.f32 %v1019, %v1005
      %v1021 = vadd.f32 %v1020, %v1006
      %v1022 = vadd.f32 %v1021, %v1007
      %v1023 = vrot.slane %v1022, 4
      %v1024 = vadd.f32 %v1022, %v1023
      %v1025 = vrot.slane %v1024, 2
      %v1026 = vadd.f32 %v1024, %v1025
      %v1027 = vrot.slane %v1026, 1
      %v1028 = vadd.f32 %v1026, %v1027
      %1029 = vst [vmem:[%s182] sm:$0xff] %v1028
      %p1030 = scmp.lt.s32.totalorder %s22, 1
      %s1031 = scalar_select %p1030, %s22, 1
      %s1032 = smul.addr %s1031, 8
      %s1033 = scalar_lea.vmem %s5, %s1032
      // Predicated region
      $region37: #{_decode_cnn_jit.3} parent=35 // pred_check
        %p1034 = pneg %p124
      $region38: #{_decode_cnn_jit.3} parent=35 // pred_check_branch
        %1036 = sbr.rel (%p1034) target = $region40
      $region39: #{_decode_cnn_jit.3} parent=35 // pred_region
        _
      $region40: #{_decode_cnn_jit.3} parent=35 // pred_fallthru
        _
    $region36: #{_decode_cnn_jit.3} parent=5 // pred_fallthru
      _
    %p1037 = scmp.le.s32.totalorder 2, %s17
    // Predicated region
    $region41: #{_decode_cnn_jit.3} parent=5 // pred_check
      %p1038 = pneg %p1037
    $region42: #{_decode_cnn_jit.3} parent=5 // pred_check_branch
      %1040 = sbr.rel (%p1038) target = $region44
    $region43: #{_decode_cnn_jit.3} parent=5 // pred_region
      %s1041 = ssub.s32 %s17, 2
      // Predicated region
      $region45: #{_decode_cnn_jit.3} parent=43 // pred_check
        %p1042 = pneg %p130
      $region46: #{_decode_cnn_jit.3} parent=43 // pred_check_branch
        %1044 = sbr.rel (%p1042) target = $region48
      $region47: #{_decode_cnn_jit.3} parent=43 // pred_region
        %p1045 = scmp.lt.s32.totalorder %s23, 1
        %s1046 = scalar_select %p1045, %s23, 1
        %s1047 = smul.addr %s1046, 8
        %s1048 = scalar_lea.vmem %s5, %s1047
      $region48: #{_decode_cnn_jit.3} parent=43 // pred_fallthru
        _
    $region44: #{_decode_cnn_jit.3} parent=5 // pred_fallthru
      _
  $region6: #{_decode_cnn_jit.3} parent=0 // loop_footer
    %s21 = sadd.s32 1, %s17
  $region7: #{_decode_cnn_jit.3} parent=0 // loop_footer_branch
    %16 = sbr.rel target = $region3
  $region8: #{_decode_cnn_jit.3} parent=0 // loop_exit
    _

</llo_original>
